<compile_context>
chip_gen: v7x
topology: tpu7x:2x2x1
jax: 0.10.0
libtpu: 0.0.40
codegen_flags: <defaults>
</compile_context>

<pallas_src>
import functools

import jax
import jax.numpy as jnp
from jax import lax
from jax.experimental import pallas as pl
from jax.experimental.pallas import tpu as pltpu


def _conv_bn_relu_kernel(x_ref, w_ref, scale_ref, shift_ref, o_ref, *,
                         KH, KW, OW, tile_oh, stride, dilation):
    # x_ref:     (1, Hp, Wp, Cin)          whole padded NHWC image, bf16
    # w_ref:     (KH*KW*Cin, Cout_p)       raw conv weights (im2col order), bf16
    # scale_ref: (1, Cout_p)               gamma / sqrt(var + eps), f32
    # shift_ref: (1, Cout_p)               beta - mean * scale,     f32
    # o_ref:     (1, Cout_p, tile_oh*OW)   channel-major output tile, bf16
    cin = x_ref.shape[-1]
    s_tile = tile_oh * OW
    t = pl.program_id(1)                    # OH-tile index
    row0 = t * (tile_oh * stride)

    # Build the im2col block for this OH tile directly from the bf16 image in
    # VMEM (no f32 upcast, no per-tap casts): one (s_tile, Cin) window per tap,
    # lane-concatenated so a single MXU pass contracts over K = KH*KW*Cin.
    parts = []
    for kh in range(KH):
        for kw in range(KW):
            r0 = row0 + kh * dilation
            c0 = kw * dilation
            if stride == 1:
                win = x_ref[0, pl.ds(r0, tile_oh), pl.ds(c0, OW), :]
            else:
                cov = x_ref[0,
                            pl.ds(r0, (tile_oh - 1) * stride + 1),
                            pl.ds(c0, (OW - 1) * stride + 1), :]
                win = lax.slice(cov, (0, 0, 0), cov.shape, (stride, stride, 1))
            parts.append(win.reshape(s_tile, cin))
    patches = parts[0] if len(parts) == 1 else jnp.concatenate(parts, axis=-1)

    # One bf16 matmul, f32 accumulation.
    acc = jnp.dot(patches, w_ref[...], preferred_element_type=jnp.float32)

    # BN (eval) + ReLU epilogue on the f32 accumulator.
    y = jnp.maximum(acc * scale_ref[...] + shift_ref[...], 0.0)   # (s_tile, Cout_p)

    # Transpose the small result so the store is lane-dense on the spatial dim
    # (output is channel-major == flattened NCHW; no wrapper transpose needed).
    o_ref[0] = jnp.transpose(y).astype(o_ref.dtype)


def _pick_tile_oh(OH, OW, max_spatial=2048):
    """Largest OH tile with lane-dense (multiple-of-128) spatial width."""
    best = None
    for t in range(1, OH + 1):
        if OH % t == 0 and (t * OW) % 128 == 0 and t * OW <= max_spatial:
            best = t
    return best if best is not None else OH   # fallback: one full-spatial tile


def basic_conv2d_relu(x_nchw, conv_w, gamma, beta, run_mean, run_var, *,
                      stride=1, padding=0, dilation=1, eps=1e-5,
                      tile_oh=None, out_dtype=jnp.bfloat16):
    """Forward of BasicConv2dReLu. x_nchw: (N, Cin, H, W); conv_w: (Cout, Cin, KH, KW)."""
    N, Cin, H, W = x_nchw.shape
    Cout, _, KH, KW = conv_w.shape
    OH = (H + 2 * padding - dilation * (KH - 1) - 1) // stride + 1
    OW = (W + 2 * padding - dilation * (KW - 1) - 1) // stride + 1
    Hp, Wp = H + 2 * padding, W + 2 * padding
    Cout_p = ((Cout + 7) // 8) * 8           # sublane-aligned; NOT padded to 128

    if (tile_oh is None or OH % tile_oh
            or (tile_oh != OH and (tile_oh * OW) % 128)):
        tile_oh = _pick_tile_oh(OH, OW)
    n_t = OH // tile_oh
    s_tile = tile_oh * OW

    # ---- trace-time glue: layout, spatial pad, BN constants ----
    # TODO(synk): in a full model keep activations NHWC end-to-end so this
    # NCHW->NHWC transpose + pad fuses into the producer instead of being an
    # extra HBM pass per layer.
    x = jnp.transpose(x_nchw, (0, 2, 3, 1)).astype(jnp.bfloat16)      # NHWC bf16
    xp = jnp.pad(x, ((0, 0), (padding, padding), (padding, padding), (0, 0)))

    scale = (gamma / jnp.sqrt(run_var + eps)).astype(jnp.float32)      # (Cout,)
    shift = (beta - run_mean * scale).astype(jnp.float32)              # (Cout,)
    scale = jnp.pad(scale, (0, Cout_p - Cout)).reshape(1, Cout_p)
    shift = jnp.pad(shift, (0, Cout_p - Cout)).reshape(1, Cout_p)

    # (Cout, Cin, KH, KW) -> (KH*KW*Cin, Cout_p): rows in the kernel's im2col
    # column order (tap-major, then input channel).  Raw bf16; BN scale is
    # applied in the f32 epilogue for accuracy.
    w = jnp.transpose(conv_w, (2, 3, 1, 0)).reshape(KH * KW * Cin, Cout)
    w = jnp.pad(w, ((0, 0), (0, Cout_p - Cout))).astype(jnp.bfloat16)

    kernel = functools.partial(_conv_bn_relu_kernel, KH=KH, KW=KW, OW=OW,
                               tile_oh=tile_oh, stride=stride, dilation=dilation)

    # VMEM budget: double-buffered image + output tile, plus weights / BN vecs.
    step_bytes = (2 * Hp * Wp * Cin * 2 + KH * KW * Cin * Cout_p * 2
                  + 2 * Cout_p * s_tile * 2 + 2 * Cout_p * 4)
    # TODO(synk): on v7x (64 MiB physical VMEM) shrink tile_oh / this limit if
    # a layer's whole padded image does not fit comfortably.
    vmem_limit = int(min(100 * 2 ** 20, max(32 * 2 ** 20, 4 * step_bytes)))

    out = pl.pallas_call(
        kernel,
        out_shape=jax.ShapeDtypeStruct((N, Cout_p, OH * OW), out_dtype),
        grid_spec=pltpu.PrefetchScalarGridSpec(
            num_scalar_prefetch=0,
            grid=(N, n_t),                                   # OH-tile axis last
            in_specs=[
                # Image block index is constant over the OH-tile axis -> the
                # image is DMA'd once per image, reused across its OH tiles.
                pl.BlockSpec((1, Hp, Wp, Cin), lambda n, t: (n, 0, 0, 0)),
                pl.BlockSpec((KH * KW * Cin, Cout_p), lambda n, t: (0, 0)),
                pl.BlockSpec((1, Cout_p), lambda n, t: (0, 0)),
                pl.BlockSpec((1, Cout_p), lambda n, t: (0, 0)),
            ],
            out_specs=pl.BlockSpec((1, Cout_p, s_tile), lambda n, t: (n, 0, t)),
        ),
        compiler_params=pltpu.CompilerParams(
            dimension_semantics=("parallel", "parallel"),
            vmem_limit_bytes=vmem_limit),
    )(xp, w, scale, shift)

    # Output is already channel-major (== flattened NCHW): only a cheap slice
    # (no-op when Cout is a multiple of 8) and a free reshape remain.
    out = out[:, :Cout, :].reshape(N, Cout, OH, OW)
    return out


def _reference(x, w, gamma, beta, mean, var, *, stride, padding, dilation, eps=1e-5):
    y = lax.conv_general_dilated(
        x, w, window_strides=(stride, stride),
        padding=((padding, padding), (padding, padding)),
        rhs_dilation=(dilation, dilation),
        dimension_numbers=("NCHW", "OIHW", "NCHW"))
    s = (gamma / jnp.sqrt(var + eps)).reshape(1, -1, 1, 1)
    b = (beta - mean * gamma / jnp.sqrt(var + eps)).reshape(1, -1, 1, 1)
    return jnp.maximum(y * s + b, 0.0)


if __name__ == "__main__":
    key = jax.random.PRNGKey(0)

    def run_case(N, Cin, H, W, Cout, K, stride, padding, dilation, tile_oh, sub):
        kx, kw_, kg, kb, km, kv = jax.random.split(jax.random.fold_in(key, sub), 6)
        x = jax.random.normal(kx, (N, Cin, H, W), dtype=jnp.float32)
        conv_w = jax.random.normal(kw_, (Cout, Cin, K, K), dtype=jnp.float32) * 0.1
        gamma = 1.0 + 0.1 * jax.random.normal(kg, (Cout,), dtype=jnp.float32)
        beta = 0.1 * jax.random.normal(kb, (Cout,), dtype=jnp.float32)
        run_mean = 0.1 * jax.random.normal(km, (Cout,), dtype=jnp.float32)
        run_var = jnp.abs(jax.random.normal(kv, (Cout,), dtype=jnp.float32)) + 0.5

        out = jax.block_until_ready(
            basic_conv2d_relu(x, conv_w, gamma, beta, run_mean, run_var,
                              stride=stride, padding=padding, dilation=dilation,
                              tile_oh=tile_oh))
        ref = _reference(x, conv_w, gamma, beta, run_mean, run_var,
                         stride=stride, padding=padding, dilation=dilation)
        assert out.shape == ref.shape, (out.shape, ref.shape)
        err = float(jnp.max(jnp.abs(out.astype(jnp.float32) - ref)))
        assert err < 5e-2, err   # bf16 operands + bf16 output -> loose tolerance

    # Module config: BasicConv2dReLu(4, 8, kernel_size=3, stride=1, padding=1).
    # tile_oh=8 -> 2 spatial tiles per image: exercises the OH-tile grid axis.
    run_case(2, 4, 16, 16, 8, 3, 1, 1, 1, 8, 0)
    # 1x1 conv variant (single-tap path, auto tile pick, larger Cout).
    run_case(1, 8, 16, 16, 16, 1, 1, 0, 1, None, 1)

    print("KERNEL_OK")
</pallas_src>

<mosaic_0001>
module attributes {stable_mosaic.version = 11 : i64} {
  func.func @_conv_bn_relu_kernel(%arg0: i32, %arg1: i32, %arg2: memref<1x18x18x4xbf16, #tpu.memory_space<vmem>>, %arg3: memref<36x8xbf16, #tpu.memory_space<vmem>>, %arg4: memref<1x8xf32, #tpu.memory_space<vmem>>, %arg5: memref<1x8xf32, #tpu.memory_space<vmem>>, %arg6: memref<1x8x128xbf16, #tpu.memory_space<vmem>>) attributes {dimension_semantics = [#tpu.dimension_semantics<parallel>, #tpu.dimension_semantics<parallel>], iteration_bounds = array<i64: 2, 2>, scalar_prefetch = 0 : i64, scratch_operands = 0 : i64, tpu.core_type = #tpu.core_type<tc>, window_params = [{transform_indices = @transform_0, window_bounds = array<i64: 1, 18, 18, 4>}, {pipeline_mode = #tpu.pipeline_mode<synchronous>, transform_indices = @transform_1, window_bounds = array<i64: 36, 8>}, {pipeline_mode = #tpu.pipeline_mode<synchronous>, transform_indices = @transform_2, window_bounds = array<i64: 1, 8>}, {pipeline_mode = #tpu.pipeline_mode<synchronous>, transform_indices = @transform_3, window_bounds = array<i64: 1, 8>}, {transform_indices = @transform_4, window_bounds = array<i64: 1, 8, 128>}]} {
    %c8_i32 = arith.constant 8 : i32
    %0 = arith.muli %arg1, %c8_i32 : i32
    %c0_i32 = arith.constant 0 : i32
    %1 = arith.addi %0, %c0_i32 : i32
    %c0 = arith.constant 0 : index
    %2 = arith.index_cast %1 : i32 to index
    %c0_0 = arith.constant 0 : index
    %c0_1 = arith.constant 0 : index
    %3 = vector.load %arg2[%c0, %2, %c0_0, %c0_1] : memref<1x18x18x4xbf16, #tpu.memory_space<vmem>>, vector<1x8x16x4xbf16>
    %4 = vector.shape_cast %3 : vector<1x8x16x4xbf16> to vector<8x16x4xbf16>
    %5 = vector.shape_cast %4 : vector<8x16x4xbf16> to vector<128x4xbf16>
    %c0_i32_2 = arith.constant 0 : i32
    %6 = arith.addi %0, %c0_i32_2 : i32
    %c0_3 = arith.constant 0 : index
    %7 = arith.index_cast %6 : i32 to index
    %c1 = arith.constant 1 : index
    %c0_4 = arith.constant 0 : index
    %8 = vector.load %arg2[%c0_3, %7, %c1, %c0_4] : memref<1x18x18x4xbf16, #tpu.memory_space<vmem>>, vector<1x8x16x4xbf16>
    %9 = vector.shape_cast %8 : vector<1x8x16x4xbf16> to vector<8x16x4xbf16>
    %10 = vector.shape_cast %9 : vector<8x16x4xbf16> to vector<128x4xbf16>
    %c0_i32_5 = arith.constant 0 : i32
    %11 = arith.addi %0, %c0_i32_5 : i32
    %c0_6 = arith.constant 0 : index
    %12 = arith.index_cast %11 : i32 to index
    %c2 = arith.constant 2 : index
    %c0_7 = arith.constant 0 : index
    %13 = vector.load %arg2[%c0_6, %12, %c2, %c0_7] : memref<1x18x18x4xbf16, #tpu.memory_space<vmem>>, vector<1x8x16x4xbf16>
    %14 = vector.shape_cast %13 : vector<1x8x16x4xbf16> to vector<8x16x4xbf16>
    %15 = vector.shape_cast %14 : vector<8x16x4xbf16> to vector<128x4xbf16>
    %c1_i32 = arith.constant 1 : i32
    %16 = arith.addi %0, %c1_i32 : i32
    %c0_8 = arith.constant 0 : index
    %17 = arith.index_cast %16 : i32 to index
    %c0_9 = arith.constant 0 : index
    %c0_10 = arith.constant 0 : index
    %18 = vector.load %arg2[%c0_8, %17, %c0_9, %c0_10] : memref<1x18x18x4xbf16, #tpu.memory_space<vmem>>, vector<1x8x16x4xbf16>
    %19 = vector.shape_cast %18 : vector<1x8x16x4xbf16> to vector<8x16x4xbf16>
    %20 = vector.shape_cast %19 : vector<8x16x4xbf16> to vector<128x4xbf16>
    %c1_i32_11 = arith.constant 1 : i32
    %21 = arith.addi %0, %c1_i32_11 : i32
    %c0_12 = arith.constant 0 : index
    %22 = arith.index_cast %21 : i32 to index
    %c1_13 = arith.constant 1 : index
    %c0_14 = arith.constant 0 : index
    %23 = vector.load %arg2[%c0_12, %22, %c1_13, %c0_14] : memref<1x18x18x4xbf16, #tpu.memory_space<vmem>>, vector<1x8x16x4xbf16>
    %24 = vector.shape_cast %23 : vector<1x8x16x4xbf16> to vector<8x16x4xbf16>
    %25 = vector.shape_cast %24 : vector<8x16x4xbf16> to vector<128x4xbf16>
    %c1_i32_15 = arith.constant 1 : i32
    %26 = arith.addi %0, %c1_i32_15 : i32
    %c0_16 = arith.constant 0 : index
    %27 = arith.index_cast %26 : i32 to index
    %c2_17 = arith.constant 2 : index
    %c0_18 = arith.constant 0 : index
    %28 = vector.load %arg2[%c0_16, %27, %c2_17, %c0_18] : memref<1x18x18x4xbf16, #tpu.memory_space<vmem>>, vector<1x8x16x4xbf16>
    %29 = vector.shape_cast %28 : vector<1x8x16x4xbf16> to vector<8x16x4xbf16>
    %30 = vector.shape_cast %29 : vector<8x16x4xbf16> to vector<128x4xbf16>
    %c2_i32 = arith.constant 2 : i32
    %31 = arith.addi %0, %c2_i32 : i32
    %c0_19 = arith.constant 0 : index
    %32 = arith.index_cast %31 : i32 to index
    %c0_20 = arith.constant 0 : index
    %c0_21 = arith.constant 0 : index
    %33 = vector.load %arg2[%c0_19, %32, %c0_20, %c0_21] : memref<1x18x18x4xbf16, #tpu.memory_space<vmem>>, vector<1x8x16x4xbf16>
    %34 = vector.shape_cast %33 : vector<1x8x16x4xbf16> to vector<8x16x4xbf16>
    %35 = vector.shape_cast %34 : vector<8x16x4xbf16> to vector<128x4xbf16>
    %c2_i32_22 = arith.constant 2 : i32
    %36 = arith.addi %0, %c2_i32_22 : i32
    %c0_23 = arith.constant 0 : index
    %37 = arith.index_cast %36 : i32 to index
    %c1_24 = arith.constant 1 : index
    %c0_25 = arith.constant 0 : index
    %38 = vector.load %arg2[%c0_23, %37, %c1_24, %c0_25] : memref<1x18x18x4xbf16, #tpu.memory_space<vmem>>, vector<1x8x16x4xbf16>
    %39 = vector.shape_cast %38 : vector<1x8x16x4xbf16> to vector<8x16x4xbf16>
    %40 = vector.shape_cast %39 : vector<8x16x4xbf16> to vector<128x4xbf16>
    %c2_i32_26 = arith.constant 2 : i32
    %41 = arith.addi %0, %c2_i32_26 : i32
    %c0_27 = arith.constant 0 : index
    %42 = arith.index_cast %41 : i32 to index
    %c2_28 = arith.constant 2 : index
    %c0_29 = arith.constant 0 : index
    %43 = vector.load %arg2[%c0_27, %42, %c2_28, %c0_29] : memref<1x18x18x4xbf16, #tpu.memory_space<vmem>>, vector<1x8x16x4xbf16>
    %44 = vector.shape_cast %43 : vector<1x8x16x4xbf16> to vector<8x16x4xbf16>
    %45 = vector.shape_cast %44 : vector<8x16x4xbf16> to vector<128x4xbf16>
    %46 = tpu.concatenate %5, %10, %15, %20, %25, %30, %35, %40, %45 in 1 : vector<128x4xbf16>, vector<128x4xbf16>, vector<128x4xbf16>, vector<128x4xbf16>, vector<128x4xbf16>, vector<128x4xbf16>, vector<128x4xbf16>, vector<128x4xbf16>, vector<128x4xbf16> -> vector<128x36xbf16>
    %c0_30 = arith.constant 0 : index
    %c0_31 = arith.constant 0 : index
    %47 = vector.load %arg3[%c0_30, %c0_31] : memref<36x8xbf16, #tpu.memory_space<vmem>>, vector<36x8xbf16>
    %cst = arith.constant dense<0.000000e+00> : vector<128x8xf32>
    %48 = tpu.matmul %46, %47, %cst {dimension_numbers = #tpu.dot_dimension_numbers<[1], [0], [0], [1], [0, 0, 1, 1], [], []>} : vector<128x36xbf16>, vector<36x8xbf16>, vector<128x8xf32> -> vector<128x8xf32>
    %c0_32 = arith.constant 0 : index
    %c0_33 = arith.constant 0 : index
    %49 = vector.load %arg4[%c0_32, %c0_33] : memref<1x8xf32, #tpu.memory_space<vmem>>, vector<1x8xf32>
    %50 = vector.broadcast %49 : vector<1x8xf32> to vector<128x8xf32>
    %51 = arith.mulf %48, %50 : vector<128x8xf32>
    %c0_34 = arith.constant 0 : index
    %c0_35 = arith.constant 0 : index
    %52 = vector.load %arg5[%c0_34, %c0_35] : memref<1x8xf32, #tpu.memory_space<vmem>>, vector<1x8xf32>
    %53 = vector.broadcast %52 : vector<1x8xf32> to vector<128x8xf32>
    %54 = arith.addf %51, %53 : vector<128x8xf32>
    %cst_36 = arith.constant 0.000000e+00 : f32
    %55 = vector.broadcast %cst_36 : f32 to vector<128x8xf32>
    %56 = arith.maximumf %54, %55 : vector<128x8xf32>
    %57 = tpu.transpose %56, [1, 0] : vector<128x8xf32> -> vector<8x128xf32>
    %58 = arith.truncf %57 : vector<8x128xf32> to vector<8x128xbf16>
    %c0_37 = arith.constant 0 : index
    %c0_38 = arith.constant 0 : index
    %c0_39 = arith.constant 0 : index
    %59 = vector.load %arg6[%c0_37, %c0_38, %c0_39] : memref<1x8x128xbf16, #tpu.memory_space<vmem>>, vector<1x8x128xbf16>
    %60 = vector.shape_cast %59 : vector<1x8x128xbf16> to vector<8x128xbf16>
    %61 = vector.shape_cast %58 : vector<8x128xbf16> to vector<1x8x128xbf16>
    tpu.vector_store %arg6[%c0_37, %c0_38, %c0_39], %61 {strides = array<i32>} : memref<1x8x128xbf16, #tpu.memory_space<vmem>>, vector<1x8x128xbf16>,
    return
  }
  func.func @transform_0(%arg0: i32, %arg1: i32) -> (i32, i32, i32, i32) {
    %c0_i32 = arith.constant 0 : i32
    %c0_i32_0 = arith.constant 0 : i32
    %c0_i32_1 = arith.constant 0 : i32
    %c0_i32_2 = arith.constant 0 : i32
    return %arg0, %c0_i32, %c0_i32_0, %c0_i32_1 : i32, i32, i32, i32
  }
  func.func @transform_1(%arg0: i32, %arg1: i32) -> (i32, i32) {
    %c0_i32 = arith.constant 0 : i32
    %c0_i32_0 = arith.constant 0 : i32
    %c0_i32_1 = arith.constant 0 : i32
    return %c0_i32, %c0_i32_0 : i32, i32
  }
  func.func @transform_2(%arg0: i32, %arg1: i32) -> (i32, i32) {
    %c0_i32 = arith.constant 0 : i32
    %c0_i32_0 = arith.constant 0 : i32
    %c0_i32_1 = arith.constant 0 : i32
    return %c0_i32, %c0_i32_0 : i32, i32
  }
  func.func @transform_3(%arg0: i32, %arg1: i32) -> (i32, i32) {
    %c0_i32 = arith.constant 0 : i32
    %c0_i32_0 = arith.constant 0 : i32
    %c0_i32_1 = arith.constant 0 : i32
    return %c0_i32, %c0_i32_0 : i32, i32
  }
  func.func @transform_4(%arg0: i32, %arg1: i32) -> (i32, i32, i32) {
    %c0_i32 = arith.constant 0 : i32
    %c0_i32_0 = arith.constant 0 : i32
    return %arg0, %c0_i32, %arg1 : i32, i32, i32
  }
}

</mosaic_0001>

<llo_original>
// kernel: tpu_custom_call.1
$region0: #{tpu_custom_call.1}
  #allocation0 [shape = 'u32[]', space=smem, size = 0x4, offset = 0x4, fixed_abs, tag = 'smem constant byte address 0x4 - core index']
  #allocation1 [shape = 'u32[144,128]{1,0:T(1,128)}', space=vmem, size = 0x12000, scoped, tag = 'internal scratch']
  %s0 = inlined_call_operand.vmem [shape: bf16[2,18,18,4], index: 0, kind: input, shape index: {}]
  %s1 = inlined_call_operand.vmem [shape: bf16[36,8], index: 1, kind: input, shape index: {}]
  %s2 = inlined_call_operand.vmem [shape: f32[1,8], index: 2, kind: input, shape index: {}]
  %s3 = inlined_call_operand.vmem [shape: f32[1,8], index: 3, kind: input, shape index: {}]
  %s4 = inlined_call_operand.hbm [shape: bf16[2,8,256], index: 4, kind: output, shape index: {}]
  %s5 = sld [smem:[#allocation0]]
  $region49: #{tpu_custom_call.1} parent=0
    _
  %s7 = ssub.s32 1, %s5
  %s8 = scalar_select 0, %s7, %s5
  $region1: #{tpu_custom_call.1} parent=0
    #allocation2 [shape = 'u8[4096]{0}', space=vmem, size = 0x1000, scoped, tag = 'output window, operand 0']
    #allocation3 [shape = 's32[2]{0}', space=sflag, size = 0x8, scoped, tag = 'scoped memory for tpu_custom_call.1']
    %9 = vsyncpa [#allocation3], 0
    %s10 = scalar_lea.sflag [#allocation3], 1
    %11 = vsyncpa %s10, 0
    loop: start=0, step=1, limit=6
    $region2: #{tpu_custom_call.1} parent=1 // loop_pre_header
      _
    $region3: #{tpu_custom_call.1} parent=1 // loop_header
      %s13 = sphi 0, %s17
      %p14 = scmp.ge.s32.totalorder %s13, 6
      %s20 = sphi 0, %s32
      %s21 = sphi 0, %s28
      %s22 = sphi 0, %s20
      %s23 = sphi 0, %s21
      %s24 = sphi 0, %s22
      %s25 = sphi 0, %s23
      %s35 = sphi 0, %s37
      %s38 = sphi 0, %s35
      %s39 = sphi 0, %s38
      %s55 = sphi 0, %s39
      %s59 = sphi 0, %s59
      %s61 = sphi 0, %s59
      %s62 = sphi 0, %s61
      %s76 = sphi 0, %s62
      %s80 = sphi 0, %s80
      %s82 = sphi 0, %s80
      %s83 = sphi 0, %s82
      %s97 = sphi 0, %s83
      %s101 = sphi 0, %s101
      %s103 = sphi 0, %s101
      %s104 = sphi 0, %s103
      %s118 = sphi 0, %s104
      %s126 = sphi 0, %s128
      %s129 = sphi 0, %s126
      %s130 = sphi 0, %s129
      %s146 = sphi 0, %s130
    $region4: #{tpu_custom_call.1} parent=1 // loop_header_branch
      %16 = sbr.rel (%p14) target = $region8
    $region5: #{tpu_custom_call.1} parent=1 // loop_body
      %s18 = ssub.s32 %s13, 1
      %s19 = ssub.s32 %s13, 2
      %s26 = sadd.s32 1, %s21
      %p27 = scmp.ge.s32.totalorder %s26, 2
      %s28 = scalar_select %p27, 0, %s26
      %s29 = sadd.s32 1, %s20
      %s30 = scalar_select %p27, %s29, %s20
      %p31 = scmp.ge.s32.totalorder %s30, 2
      %s32 = scalar_select %p31, 0, %s30
      %s33 = ssub.s32 %s20, %s32
      %p34 = scmp.eq.s32.totalorder %s33, 0
      %s36 = sadd.s32 %s35, 1
      %s37 = scalar_select %p34, %s35, %s36
      %p40 = pneg %p34
      %p41 = scmp.eq.s32.totalorder %s13, 3
      %p42 = por %p40, %p41
      %p43 = scmp.ne.s32.totalorder %s35, %s38
      %p44 = scmp.eq.s32.totalorder %s13, 0
      %p45 = por %p43, %p44
      %p46 = scmp.ne.s32.totalorder %s35, %s38
      %p47 = scmp.eq.s32.totalorder %s18, 3
      %p48 = por %p46, %p47
      %p49 = scmp.ne.s32.totalorder %s38, %s39
      %p50 = scmp.eq.s32.totalorder %s18, 0
      %p51 = por %p49, %p50
      %p52 = scmp.ne.s32.totalorder %s38, %s39
      %p53 = scmp.eq.s32.totalorder %s19, 3
      %p54 = por %p52, %p53
      %p56 = scmp.ne.s32.totalorder %s39, %s55
      %p57 = scmp.eq.s32.totalorder %s19, 0
      %p58 = por %p56, %p57
      %s60 = sadd.s32 %s59, 1
      %p63 = scmp.eq.s32.totalorder %s13, 3
      %p64 = scmp.ne.s32.totalorder %s59, %s61
      %p65 = scmp.eq.s32.totalorder %s13, 0
      %p66 = por %p64, %p65
      %p67 = scmp.ne.s32.totalorder %s59, %s61
      %p68 = scmp.eq.s32.totalorder %s18, 3
      %p69 = por %p67, %p68
      %p70 = scmp.ne.s32.totalorder %s61, %s62
      %p71 = scmp.eq.s32.totalorder %s18, 0
      %p72 = por %p70, %p71
      %p73 = scmp.ne.s32.totalorder %s61, %s62
      %p74 = scmp.eq.s32.totalorder %s19, 3
      %p75 = por %p73, %p74
      %p77 = scmp.ne.s32.totalorder %s62, %s76
      %p78 = scmp.eq.s32.totalorder %s19, 0
      %p79 = por %p77, %p78
      %s81 = sadd.s32 %s80, 1
      %p84 = scmp.eq.s32.totalorder %s13, 3
      %p85 = scmp.ne.s32.totalorder %s80, %s82
      %p86 = scmp.eq.s32.totalorder %s13, 0
      %p87 = por %p85, %p86
      %p88 = scmp.ne.s32.totalorder %s80, %s82
      %p89 = scmp.eq.s32.totalorder %s18, 3
      %p90 = por %p88, %p89
      %p91 = scmp.ne.s32.totalorder %s82, %s83
      %p92 = scmp.eq.s32.totalorder %s18, 0
      %p93 = por %p91, %p92
      %p94 = scmp.ne.s32.totalorder %s82, %s83
      %p95 = scmp.eq.s32.totalorder %s19, 3
      %p96 = por %p94, %p95
      %p98 = scmp.ne.s32.totalorder %s83, %s97
      %p99 = scmp.eq.s32.totalorder %s19, 0
      %p100 = por %p98, %p99
      %s102 = sadd.s32 %s101, 1
      %p105 = scmp.eq.s32.totalorder %s13, 3
      %p106 = scmp.ne.s32.totalorder %s101, %s103
      %p107 = scmp.eq.s32.totalorder %s13, 0
      %p108 = por %p106, %p107
      %p109 = scmp.ne.s32.totalorder %s101, %s103
      %p110 = scmp.eq.s32.totalorder %s18, 3
      %p111 = por %p109, %p110
      %p112 = scmp.ne.s32.totalorder %s103, %s104
      %p113 = scmp.eq.s32.totalorder %s18, 0
      %p114 = por %p112, %p113
      %p115 = scmp.ne.s32.totalorder %s103, %s104
      %p116 = scmp.eq.s32.totalorder %s19, 3
      %p117 = por %p115, %p116
      %p119 = scmp.ne.s32.totalorder %s104, %s118
      %p120 = scmp.eq.s32.totalorder %s19, 0
      %p121 = por %p119, %p120
      %s122 = ssub.s32 %s20, %s32
      %s123 = ssub.s32 %s21, %s28
      %s124 = sor.u32 %s122, %s123
      %p125 = scmp.eq.s32.totalorder %s124, 0
      %s127 = sadd.s32 %s126, 1
      %s128 = scalar_select %p125, %s126, %s127
      %p131 = pneg %p125
      %p132 = scmp.eq.s32.totalorder %s13, 3
      %p133 = por %p131, %p132
      %p134 = scmp.ne.s32.totalorder %s126, %s129
      %p135 = scmp.eq.s32.totalorder %s13, 0
      %p136 = por %p134, %p135
      %p137 = scmp.ne.s32.totalorder %s126, %s129
      %p138 = scmp.eq.s32.totalorder %s18, 3
      %p139 = por %p137, %p138
      %p140 = scmp.ne.s32.totalorder %s129, %s130
      %p141 = scmp.eq.s32.totalorder %s18, 0
      %p142 = por %p140, %p141
      %p143 = scmp.ne.s32.totalorder %s129, %s130
      %p144 = scmp.eq.s32.totalorder %s19, 3
      %p145 = por %p143, %p144
      %p147 = scmp.ne.s32.totalorder %s130, %s146
      %p148 = scmp.eq.s32.totalorder %s19, 0
      %p149 = por %p147, %p148
      %p150 = scmp.le.s32.totalorder 1, %s13
      %p151 = scmp.lt.s32.totalorder %s13, 5
      %p152 = pnand %p150, %p151
      %p153 = pneg %p152
      // Predicated region
      $region9: #{tpu_custom_call.1} parent=5 // pred_check
        _
      $region10: #{tpu_custom_call.1} parent=5 // pred_check_branch
        %155 = sbr.rel (%p152) target = $region12
      $region11: #{tpu_custom_call.1} parent=5 // pred_region
        %s156 = ssub.s32 %s13, 1
        // Predicated region
        $region13: #{tpu_custom_call.1} parent=11 // pred_check
          %p157 = pneg %p72
        $region14: #{tpu_custom_call.1} parent=11 // pred_check_branch
          %159 = sbr.rel (%p157) target = $region16
        $region15: #{tpu_custom_call.1} parent=11 // pred_region
          _
        $region16: #{tpu_custom_call.1} parent=11 // pred_fallthru
          _
        // Predicated region
        $region17: #{tpu_custom_call.1} parent=11 // pred_check
          %p160 = pneg %p93
        $region18: #{tpu_custom_call.1} parent=11 // pred_check_branch
          %162 = sbr.rel (%p160) target = $region20
        $region19: #{tpu_custom_call.1} parent=11 // pred_region
          _
        $region20: #{tpu_custom_call.1} parent=11 // pred_fallthru
          _
        // Predicated region
        $region21: #{tpu_custom_call.1} parent=11 // pred_check
          %p163 = pneg %p114
        $region22: #{tpu_custom_call.1} parent=11 // pred_check_branch
          %165 = sbr.rel (%p163) target = $region24
        $region23: #{tpu_custom_call.1} parent=11 // pred_region
          _
        $region24: #{tpu_custom_call.1} parent=11 // pred_fallthru
          _
      $region12: #{tpu_custom_call.1} parent=5 // pred_fallthru
        _
      %p166 = scmp.lt.s32.totalorder %s13, 4
      // Predicated region
      $region25: #{tpu_custom_call.1} parent=5 // pred_check
        %p167 = pneg %p166
      $region26: #{tpu_custom_call.1} parent=5 // pred_check_branch
        %169 = sbr.rel (%p167) target = $region28
      $region27: #{tpu_custom_call.1} parent=5 // pred_region
        // Predicated region
        $region29: #{tpu_custom_call.1} parent=27 // pred_check
          %p170 = pneg %p45
        $region30: #{tpu_custom_call.1} parent=27 // pred_check_branch
          %172 = sbr.rel (%p170) target = $region32
        $region31: #{tpu_custom_call.1} parent=27 // pred_region
          %p173 = scmp.lt.s32.totalorder %s20, 1
          %s174 = scalar_select %p173, %s20, 1
          %s175 = smul.addr %s174, 54
          %s176 = smul.addr %s175, 4
          %s177 = scalar_lea.vmem %s0, %s176
        $region32: #{tpu_custom_call.1} parent=27 // pred_fallthru
          _
      $region28: #{tpu_custom_call.1} parent=5 // pred_fallthru
        _
      %p178 = scmp.le.s32.totalorder 1, %s13
      %p179 = scmp.lt.s32.totalorder %s13, 5
      %p180 = pnand %p178, %p179
      %p181 = pneg %p180
      // Predicated region
      $region33: #{tpu_custom_call.1} parent=5 // pred_check
        _
      $region34: #{tpu_custom_call.1} parent=5 // pred_check_branch
        %183 = sbr.rel (%p180) target = $region36
      $region35: #{tpu_custom_call.1} parent=5 // pred_region
        %s184 = ssub.s32 %s13, 1
        %p185 = scmp.lt.s32.totalorder %s22, 1
        %s186 = scalar_select %p185, %s22, 1
        %s187 = smul.addr %s186, 54
        %s188 = smul.addr %s187, 4
        %s189 = scalar_lea.vmem %s0, %s188
        %p190 = pneg %p51
        %p191 = pneg %p48
        %p192 = pneg %p72
        %p193 = pneg %p69
        %p194 = pneg %p93
        %p195 = pneg %p90
        %p196 = pneg %p114
        %p197 = pneg %p111
        %p198 = pneg %p142
        %p199 = pneg %p139
        %s200 = sand.u32 %s129, 1
        %s201 = scalar_lea.sflag [#allocation3], %s200
        %s202 = sand.u32 %s129, 1
        %s203 = smul.addr %s202, 4
        %s204 = scalar_lea.vmem [#allocation2], %s203
        %p205 = scmp.lt.s32.totalorder %s22, 1
        %s206 = scalar_select %p205, %s22, 1
        %s207 = smul.addr %s206, 54
        %s208 = smul.addr %s207, 4
        %s209 = scalar_lea.vmem %s0, %s208
        %s211 = smul.u32 %s23, 8
        %s212 = smul.u32 %s211, 3
        %s213 = smul.addr %s212, 4
        %s214 = scalar_lea.vmem %s209, %s213
        %v215 = vld [vmem:[%s214] sm:$0xf]
        %v216 = vld [vmem:[%s214 + $0x4] sm:$0xf]
        %v217 = vld [vmem:[%s214 + $0xc] sm:$0xf]
        %v218 = vld [vmem:[%s214 + $0x10] sm:$0xf]
        %v219 = vld [vmem:[%s214 + $0x18] sm:$0xf]
        %v220 = vld [vmem:[%s214 + $0x1c] sm:$0xf]
        %v221 = vld [vmem:[%s214 + $0x24] sm:$0xf]
        %v222 = vld [vmem:[%s214 + $0x28] sm:$0xf]
        %v223 = vld [vmem:[%s214 + $0x30] sm:$0xf]
        %v224 = vld [vmem:[%s214 + $0x34] sm:$0xf]
        %v225 = vld [vmem:[%s214 + $0x3c] sm:$0xf]
        %v226 = vld [vmem:[%s214 + $0x40] sm:$0xf]
        %v227 = vld [vmem:[%s214 + $0x48] sm:$0xf]
        %v228 = vld [vmem:[%s214 + $0x4c] sm:$0xf]
        %v229 = vld [vmem:[%s214 + $0x54] sm:$0xf]
        %v230 = vld [vmem:[%s214 + $0x58] sm:$0xf]
        %v231 = vld [vmem:[%s214 + $0x8] sm:$0x1]
        %v232 = vld [vmem:[%s214 + $0x14] sm:$0x1]
        %v233 = vld [vmem:[%s214 + $0x20] sm:$0x1]
        %v234 = vld [vmem:[%s214 + $0x2c] sm:$0x1]
        %v235 = vld [vmem:[%s214 + $0x38] sm:$0x1]
        %v236 = vld [vmem:[%s214 + $0x44] sm:$0x1]
        %v237 = vld [vmem:[%s214 + $0x50] sm:$0x1]
        %v238 = vld [vmem:[%s214 + $0x5c] sm:$0x1]
        %vm239 = vsmask.f32 3328
        %vm240 = vsmask.f32 7440
        %vm241 = vmor %vm239, %vm240
        %v243 = vshrl.u32 %v215, 16
        %v245 = vrot.slane %v243, 4
        %v246 = vshll.u32 %v215, 16
        %v248 = vrot.slane %v246, 5
        %v249 = vor.u32 %v245, %v248
        %v250 = vrot.slane %v249, 4
        %v252 = vshll.u32 %v216, 16
        %v254 = vrot.slane %v252, 5
        %v255 = vsel %vm241, %v250, %v254
        %v256 = vshrl.u32 %v216, 16
        %v258 = vrot.slane %v256, 4
        %v259 = vor.u32 %v258, %v254
        %v260 = vrot.slane %v259, 4
        %v262 = vshll.u32 %v231, 16
        %v264 = vrot.slane %v262, 5
        %v265 = vsel %vm241, %v260, %v264
        %v267 = vshrl.u32 %v217, 16
        %v269 = vrot.slane %v267, 4
        %v270 = vshll.u32 %v217, 16
        %v272 = vrot.slane %v270, 5
        %v273 = vor.u32 %v269, %v272
        %v274 = vrot.slane %v273, 4
        %v276 = vshll.u32 %v218, 16
        %v278 = vrot.slane %v276, 5
        %v279 = vsel %vm241, %v274, %v278
        %v280 = vshrl.u32 %v218, 16
        %v282 = vrot.slane %v280, 4
        %v283 = vor.u32 %v282, %v278
        %v284 = vrot.slane %v283, 4
        %v286 = vshll.u32 %v232, 16
        %v288 = vrot.slane %v286, 5
        %v289 = vsel %vm241, %v284, %v288
        %v291 = vshrl.u32 %v219, 16
        %v293 = vrot.slane %v291, 4
        %v294 = vshll.u32 %v219, 16
        %v296 = vrot.slane %v294, 5
        %v297 = vor.u32 %v293, %v296
        %v298 = vrot.slane %v297, 4
        %v300 = vshll.u32 %v220, 16
        %v302 = vrot.slane %v300, 5
        %v303 = vsel %vm241, %v298, %v302
        %v304 = vshrl.u32 %v220, 16
        %v306 = vrot.slane %v304, 4
        %v307 = vor.u32 %v306, %v302
        %v308 = vrot.slane %v307, 4
        %v310 = vshll.u32 %v233, 16
        %v312 = vrot.slane %v310, 5
        %v313 = vsel %vm241, %v308, %v312
        %v315 = vshrl.u32 %v221, 16
        %v317 = vrot.slane %v315, 4
        %v318 = vshll.u32 %v221, 16
        %v320 = vrot.slane %v318, 5
        %v321 = vor.u32 %v317, %v320
        %v322 = vrot.slane %v321, 4
        %v324 = vshll.u32 %v222, 16
        %v326 = vrot.slane %v324, 5
        %v327 = vsel %vm241, %v322, %v326
        %v328 = vshrl.u32 %v222, 16
        %v330 = vrot.slane %v328, 4
        %v331 = vor.u32 %v330, %v326
        %v332 = vrot.slane %v331, 4
        %v334 = vshll.u32 %v234, 16
        %v336 = vrot.slane %v334, 5
        %v337 = vsel %vm241, %v332, %v336
        %v339 = vshrl.u32 %v223, 16
        %v341 = vrot.slane %v339, 4
        %v342 = vshll.u32 %v223, 16
        %v344 = vrot.slane %v342, 5
        %v345 = vor.u32 %v341, %v344
        %v346 = vrot.slane %v345, 4
        %v348 = vshll.u32 %v224, 16
        %v350 = vrot.slane %v348, 5
        %v351 = vsel %vm241, %v346, %v350
        %v352 = vshrl.u32 %v224, 16
        %v354 = vrot.slane %v352, 4
        %v355 = vor.u32 %v354, %v350
        %v356 = vrot.slane %v355, 4
        %v358 = vshll.u32 %v235, 16
        %v360 = vrot.slane %v358, 5
        %v361 = vsel %vm241, %v356, %v360
        %v363 = vshrl.u32 %v225, 16
        %v365 = vrot.slane %v363, 4
        %v366 = vshll.u32 %v225, 16
        %v368 = vrot.slane %v366, 5
        %v369 = vor.u32 %v365, %v368
        %v370 = vrot.slane %v369, 4
        %v372 = vshll.u32 %v226, 16
        %v374 = vrot.slane %v372, 5
        %v375 = vsel %vm241, %v370, %v374
        %v376 = vshrl.u32 %v226, 16
        %v378 = vrot.slane %v376, 4
        %v379 = vor.u32 %v378, %v374
        %v380 = vrot.slane %v379, 4
        %v382 = vshll.u32 %v236, 16
        %v384 = vrot.slane %v382, 5
        %v385 = vsel %vm241, %v380, %v384
        %v387 = vshrl.u32 %v227, 16
        %v389 = vrot.slane %v387, 4
        %v390 = vshll.u32 %v227, 16
        %v392 = vrot.slane %v390, 5
        %v393 = vor.u32 %v389, %v392
        %v394 = vrot.slane %v393, 4
        %v396 = vshll.u32 %v228, 16
        %v398 = vrot.slane %v396, 5
        %v399 = vsel %vm241, %v394, %v398
        %v400 = vshrl.u32 %v228, 16
        %v402 = vrot.slane %v400, 4
        %v403 = vor.u32 %v402, %v398
        %v404 = vrot.slane %v403, 4
        %v406 = vshll.u32 %v237, 16
        %v408 = vrot.slane %v406, 5
        %v409 = vsel %vm241, %v404, %v408
        %v411 = vshrl.u32 %v229, 16
        %v413 = vrot.slane %v411, 4
        %v414 = vshll.u32 %v229, 16
        %v416 = vrot.slane %v414, 5
        %v417 = vor.u32 %v413, %v416
        %v418 = vrot.slane %v417, 4
        %v420 = vshll.u32 %v230, 16
        %v422 = vrot.slane %v420, 5
        %v423 = vsel %vm241, %v418, %v422
        %v424 = vshrl.u32 %v230, 16
        %v426 = vrot.slane %v424, 4
        %v427 = vor.u32 %v426, %v422
        %v428 = vrot.slane %v427, 4
        %v430 = vshll.u32 %v238, 16
        %v432 = vrot.slane %v430, 5
        %v433 = vsel %vm241, %v428, %v432
        %v434 = vld [vmem:[%s214] sm:$0xe]
        %v435 = vld [vmem:[%s214 + $0xc] sm:$0xe]
        %v436 = vld [vmem:[%s214 + $0x18] sm:$0xe]
        %v437 = vld [vmem:[%s214 + $0x24] sm:$0xe]
        %v438 = vld [vmem:[%s214 + $0x30] sm:$0xe]
        %v439 = vld [vmem:[%s214 + $0x3c] sm:$0xe]
        %v440 = vld [vmem:[%s214 + $0x48] sm:$0xe]
        %v441 = vld [vmem:[%s214 + $0x54] sm:$0xe]
        %vm466 = vcmask 1042432
        %vm467 = vcmask 1046532
        %vm468 = vmor %vm466, %vm467
        %v469 = vrot.slane %v434, 5
        %v470 = vrot.slane %v469, 4
        %v471 = vrot.slane %v216, 5
        %v472 = vsel %vm468, %v470, %v471
        %v473 = vrot.slane %v471, 4
        %v474 = vrot.slane %v231, 5
        %v475 = vsel %vm468, %v473, %v474
        %v476 = vrot.slane %v435, 5
        %v477 = vrot.slane %v476, 4
        %v478 = vrot.slane %v218, 5
        %v479 = vsel %vm468, %v477, %v478
        %v480 = vrot.slane %v478, 4
        %v481 = vrot.slane %v232, 5
        %v482 = vsel %vm468, %v480, %v481
        %v483 = vrot.slane %v436, 5
        %v484 = vrot.slane %v483, 4
        %v485 = vrot.slane %v220, 5
        %v486 = vsel %vm468, %v484, %v485
        %v487 = vrot.slane %v485, 4
        %v488 = vrot.slane %v233, 5
        %v489 = vsel %vm468, %v487, %v488
        %v490 = vrot.slane %v437, 5
        %v491 = vrot.slane %v490, 4
        %v492 = vrot.slane %v222, 5
        %v493 = vsel %vm468, %v491, %v492
        %v494 = vrot.slane %v492, 4
        %v495 = vrot.slane %v234, 5
        %v496 = vsel %vm468, %v494, %v495
        %v497 = vrot.slane %v438, 5
        %v498 = vrot.slane %v497, 4
        %v499 = vrot.slane %v224, 5
        %v500 = vsel %vm468, %v498, %v499
        %v501 = vrot.slane %v499, 4
        %v502 = vrot.slane %v235, 5
        %v503 = vsel %vm468, %v501, %v502
        %v504 = vrot.slane %v439, 5
        %v505 = vrot.slane %v504, 4
        %v506 = vrot.slane %v226, 5
        %v507 = vsel %vm468, %v505, %v506
        %v508 = vrot.slane %v506, 4
        %v509 = vrot.slane %v236, 5
        %v510 = vsel %vm468, %v508, %v509
        %v511 = vrot.slane %v440, 5
        %v512 = vrot.slane %v511, 4
        %v513 = vrot.slane %v228, 5
        %v514 = vsel %vm468, %v512, %v513
        %v515 = vrot.slane %v513, 4
        %v516 = vrot.slane %v237, 5
        %v517 = vsel %vm468, %v515, %v516
        %v518 = vrot.slane %v441, 5
        %v519 = vrot.slane %v518, 4
        %v520 = vrot.slane %v230, 5
        %v521 = vsel %vm468, %v519, %v520
        %v522 = vrot.slane %v520, 4
        %v523 = vrot.slane %v238, 5
        %v524 = vsel %vm468, %v522, %v523
        %s525 = sadd.s32 %s211, 1
        %s526 = smul.u32 %s525, 3
        %s527 = smul.addr %s526, 4
        %s528 = scalar_lea.vmem %s209, %s527
        %v529 = vld [vmem:[%s528] sm:$0xf]
        %v530 = vld [vmem:[%s528 + $0x4] sm:$0xf]
        %v531 = vld [vmem:[%s528 + $0xc] sm:$0xf]
        %v532 = vld [vmem:[%s528 + $0x10] sm:$0xf]
        %v533 = vld [vmem:[%s528 + $0x18] sm:$0xf]
        %v534 = vld [vmem:[%s528 + $0x1c] sm:$0xf]
        %v535 = vld [vmem:[%s528 + $0x24] sm:$0xf]
        %v536 = vld [vmem:[%s528 + $0x28] sm:$0xf]
        %v537 = vld [vmem:[%s528 + $0x30] sm:$0xf]
        %v538 = vld [vmem:[%s528 + $0x34] sm:$0xf]
        %v539 = vld [vmem:[%s528 + $0x3c] sm:$0xf]
        %v540 = vld [vmem:[%s528 + $0x40] sm:$0xf]
        %v541 = vld [vmem:[%s528 + $0x48] sm:$0xf]
        %v542 = vld [vmem:[%s528 + $0x4c] sm:$0xf]
        %v543 = vld [vmem:[%s528 + $0x54] sm:$0xf]
        %v544 = vld [vmem:[%s528 + $0x58] sm:$0xf]
        %v545 = vld [vmem:[%s528 + $0x8] sm:$0x1]
        %v546 = vld [vmem:[%s528 + $0x14] sm:$0x1]
        %v547 = vld [vmem:[%s528 + $0x20] sm:$0x1]
        %v548 = vld [vmem:[%s528 + $0x2c] sm:$0x1]
        %v549 = vld [vmem:[%s528 + $0x38] sm:$0x1]
        %v550 = vld [vmem:[%s528 + $0x44] sm:$0x1]
        %v551 = vld [vmem:[%s528 + $0x50] sm:$0x1]
        %v552 = vld [vmem:[%s528 + $0x5c] sm:$0x1]
        %v554 = vshrl.u32 %v529, 16
        %v556 = vrot.slane %v554, 4
        %v557 = vshll.u32 %v529, 16
        %v559 = vrot.slane %v557, 5
        %v560 = vor.u32 %v556, %v559
        %v561 = vrot.slane %v560, 4
        %v563 = vshll.u32 %v530, 16
        %v565 = vrot.slane %v563, 5
        %v566 = vsel %vm241, %v561, %v565
        %v567 = vshrl.u32 %v530, 16
        %v569 = vrot.slane %v567, 4
        %v570 = vor.u32 %v569, %v565
        %v571 = vrot.slane %v570, 4
        %v573 = vshll.u32 %v545, 16
        %v575 = vrot.slane %v573, 5
        %v576 = vsel %vm241, %v571, %v575
        %v578 = vshrl.u32 %v531, 16
        %v580 = vrot.slane %v578, 4
        %v581 = vshll.u32 %v531, 16
        %v583 = vrot.slane %v581, 5
        %v584 = vor.u32 %v580, %v583
        %v585 = vrot.slane %v584, 4
        %v587 = vshll.u32 %v532, 16
        %v589 = vrot.slane %v587, 5
        %v590 = vsel %vm241, %v585, %v589
        %v591 = vshrl.u32 %v532, 16
        %v593 = vrot.slane %v591, 4
        %v594 = vor.u32 %v593, %v589
        %v595 = vrot.slane %v594, 4
        %v597 = vshll.u32 %v546, 16
        %v599 = vrot.slane %v597, 5
        %v600 = vsel %vm241, %v595, %v599
        %v602 = vshrl.u32 %v533, 16
        %v604 = vrot.slane %v602, 4
        %v605 = vshll.u32 %v533, 16
        %v607 = vrot.slane %v605, 5
        %v608 = vor.u32 %v604, %v607
        %v609 = vrot.slane %v608, 4
        %v611 = vshll.u32 %v534, 16
        %v613 = vrot.slane %v611, 5
        %v614 = vsel %vm241, %v609, %v613
        %v615 = vshrl.u32 %v534, 16
        %v617 = vrot.slane %v615, 4
        %v618 = vor.u32 %v617, %v613
        %v619 = vrot.slane %v618, 4
        %v621 = vshll.u32 %v547, 16
        %v623 = vrot.slane %v621, 5
        %v624 = vsel %vm241, %v619, %v623
        %v626 = vshrl.u32 %v535, 16
        %v628 = vrot.slane %v626, 4
        %v629 = vshll.u32 %v535, 16
        %v631 = vrot.slane %v629, 5
        %v632 = vor.u32 %v628, %v631
        %v633 = vrot.slane %v632, 4
        %v635 = vshll.u32 %v536, 16
        %v637 = vrot.slane %v635, 5
        %v638 = vsel %vm241, %v633, %v637
        %v639 = vshrl.u32 %v536, 16
        %v641 = vrot.slane %v639, 4
        %v642 = vor.u32 %v641, %v637
        %v643 = vrot.slane %v642, 4
        %v645 = vshll.u32 %v548, 16
        %v647 = vrot.slane %v645, 5
        %v648 = vsel %vm241, %v643, %v647
        %v650 = vshrl.u32 %v537, 16
        %v652 = vrot.slane %v650, 4
        %v653 = vshll.u32 %v537, 16
        %v655 = vrot.slane %v653, 5
        %v656 = vor.u32 %v652, %v655
        %v657 = vrot.slane %v656, 4
        %v659 = vshll.u32 %v538, 16
        %v661 = vrot.slane %v659, 5
        %v662 = vsel %vm241, %v657, %v661
        %v663 = vshrl.u32 %v538, 16
        %v665 = vrot.slane %v663, 4
        %v666 = vor.u32 %v665, %v661
        %v667 = vrot.slane %v666, 4
        %v669 = vshll.u32 %v549, 16
        %v671 = vrot.slane %v669, 5
        %v672 = vsel %vm241, %v667, %v671
        %v674 = vshrl.u32 %v539, 16
        %v676 = vrot.slane %v674, 4
        %v677 = vshll.u32 %v539, 16
        %v679 = vrot.slane %v677, 5
        %v680 = vor.u32 %v676, %v679
        %v681 = vrot.slane %v680, 4
        %v683 = vshll.u32 %v540, 16
        %v685 = vrot.slane %v683, 5
        %v686 = vsel %vm241, %v681, %v685
        %v687 = vshrl.u32 %v540, 16
        %v689 = vrot.slane %v687, 4
        %v690 = vor.u32 %v689, %v685
        %v691 = vrot.slane %v690, 4
        %v693 = vshll.u32 %v550, 16
        %v695 = vrot.slane %v693, 5
        %v696 = vsel %vm241, %v691, %v695
        %v698 = vshrl.u32 %v541, 16
        %v700 = vrot.slane %v698, 4
        %v701 = vshll.u32 %v541, 16
        %v703 = vrot.slane %v701, 5
        %v704 = vor.u32 %v700, %v703
        %v705 = vrot.slane %v704, 4
        %v707 = vshll.u32 %v542, 16
        %v709 = vrot.slane %v707, 5
        %v710 = vsel %vm241, %v705, %v709
        %v711 = vshrl.u32 %v542, 16
        %v713 = vrot.slane %v711, 4
        %v714 = vor.u32 %v713, %v709
        %v715 = vrot.slane %v714, 4
        %v717 = vshll.u32 %v551, 16
        %v719 = vrot.slane %v717, 5
        %v720 = vsel %vm241, %v715, %v719
        %v722 = vshrl.u32 %v543, 16
        %v724 = vrot.slane %v722, 4
        %v725 = vshll.u32 %v543, 16
        %v727 = vrot.slane %v725, 5
        %v728 = vor.u32 %v724, %v727
        %v729 = vrot.slane %v728, 4
        %v731 = vshll.u32 %v544, 16
        %v733 = vrot.slane %v731, 5
        %v734 = vsel %vm241, %v729, %v733
        %v735 = vshrl.u32 %v544, 16
        %v737 = vrot.slane %v735, 4
        %v738 = vor.u32 %v737, %v733
        %v739 = vrot.slane %v738, 4
        %v741 = vshll.u32 %v552, 16
        %v743 = vrot.slane %v741, 5
        %v744 = vsel %vm241, %v739, %v743
        %v745 = vld [vmem:[%s528] sm:$0xe]
        %v746 = vld [vmem:[%s528 + $0xc] sm:$0xe]
        %v747 = vld [vmem:[%s528 + $0x18] sm:$0xe]
        %v748 = vld [vmem:[%s528 + $0x24] sm:$0xe]
        %v749 = vld [vmem:[%s528 + $0x30] sm:$0xe]
        %v750 = vld [vmem:[%s528 + $0x3c] sm:$0xe]
        %v751 = vld [vmem:[%s528 + $0x48] sm:$0xe]
        %v752 = vld [vmem:[%s528 + $0x54] sm:$0xe]
        %v777 = vrot.slane %v745, 5
        %v778 = vrot.slane %v777, 4
        %v779 = vrot.slane %v530, 5
        %v780 = vsel %vm468, %v778, %v779
        %v781 = vrot.slane %v779, 4
        %v782 = vrot.slane %v545, 5
        %v783 = vsel %vm468, %v781, %v782
        %v784 = vrot.slane %v746, 5
        %v785 = vrot.slane %v784, 4
        %v786 = vrot.slane %v532, 5
        %v787 = vsel %vm468, %v785, %v786
        %v788 = vrot.slane %v786, 4
        %v789 = vrot.slane %v546, 5
        %v790 = vsel %vm468, %v788, %v789
        %v791 = vrot.slane %v747, 5
        %v792 = vrot.slane %v791, 4
        %v793 = vrot.slane %v534, 5
        %v794 = vsel %vm468, %v792, %v793
        %v795 = vrot.slane %v793, 4
        %v796 = vrot.slane %v547, 5
        %v797 = vsel %vm468, %v795, %v796
        %v798 = vrot.slane %v748, 5
        %v799 = vrot.slane %v798, 4
        %v800 = vrot.slane %v536, 5
        %v801 = vsel %vm468, %v799, %v800
        %v802 = vrot.slane %v800, 4
        %v803 = vrot.slane %v548, 5
        %v804 = vsel %vm468, %v802, %v803
        %v805 = vrot.slane %v749, 5
        %v806 = vrot.slane %v805, 4
        %v807 = vrot.slane %v538, 5
        %v808 = vsel %vm468, %v806, %v807
        %v809 = vrot.slane %v807, 4
        %v810 = vrot.slane %v549, 5
        %v811 = vsel %vm468, %v809, %v810
        %v812 = vrot.slane %v750, 5
        %v813 = vrot.slane %v812, 4
        %v814 = vrot.slane %v540, 5
        %v815 = vsel %vm468, %v813, %v814
        %v816 = vrot.slane %v814, 4
        %v817 = vrot.slane %v550, 5
        %v818 = vsel %vm468, %v816, %v817
        %v819 = vrot.slane %v751, 5
        %v820 = vrot.slane %v819, 4
        %v821 = vrot.slane %v542, 5
        %v822 = vsel %vm468, %v820, %v821
        %v823 = vrot.slane %v821, 4
        %v824 = vrot.slane %v551, 5
        %v825 = vsel %vm468, %v823, %v824
        %v826 = vrot.slane %v752, 5
        %v827 = vrot.slane %v826, 4
        %v828 = vrot.slane %v544, 5
        %v829 = vsel %vm468, %v827, %v828
        %v830 = vrot.slane %v828, 4
        %v831 = vrot.slane %v552, 5
        %v832 = vsel %vm468, %v830, %v831
        %s833 = sadd.s32 %s211, 2
        %s834 = smul.u32 %s833, 3
        %s835 = smul.addr %s834, 4
        %s836 = scalar_lea.vmem %s209, %s835
        %v837 = vld [vmem:[%s836] sm:$0xf]
        %v838 = vld [vmem:[%s836 + $0x4] sm:$0xf]
        %v839 = vld [vmem:[%s836 + $0xc] sm:$0xf]
        %v840 = vld [vmem:[%s836 + $0x10] sm:$0xf]
        %v841 = vld [vmem:[%s836 + $0x18] sm:$0xf]
        %v842 = vld [vmem:[%s836 + $0x1c] sm:$0xf]
        %v843 = vld [vmem:[%s836 + $0x24] sm:$0xf]
        %v844 = vld [vmem:[%s836 + $0x28] sm:$0xf]
        %v845 = vld [vmem:[%s836 + $0x30] sm:$0xf]
        %v846 = vld [vmem:[%s836 + $0x34] sm:$0xf]
        %v847 = vld [vmem:[%s836 + $0x3c] sm:$0xf]
        %v848 = vld [vmem:[%s836 + $0x40] sm:$0xf]
        %v849 = vld [vmem:[%s836 + $0x48] sm:$0xf]
        %v850 = vld [vmem:[%s836 + $0x4c] sm:$0xf]
        %v851 = vld [vmem:[%s836 + $0x54] sm:$0xf]
        %v852 = vld [vmem:[%s836 + $0x58] sm:$0xf]
        %v853 = vld [vmem:[%s836 + $0x8] sm:$0x1]
        %v854 = vld [vmem:[%s836 + $0x14] sm:$0x1]
        %v855 = vld [vmem:[%s836 + $0x20] sm:$0x1]
        %v856 = vld [vmem:[%s836 + $0x2c] sm:$0x1]
        %v857 = vld [vmem:[%s836 + $0x38] sm:$0x1]
        %v858 = vld [vmem:[%s836 + $0x44] sm:$0x1]
        %v859 = vld [vmem:[%s836 + $0x50] sm:$0x1]
        %v860 = vld [vmem:[%s836 + $0x5c] sm:$0x1]
        %v862 = vshrl.u32 %v837, 16
        %v864 = vrot.slane %v862, 4
        %v865 = vshll.u32 %v837, 16
        %v867 = vrot.slane %v865, 5
        %v868 = vor.u32 %v864, %v867
        %v869 = vrot.slane %v868, 4
        %v871 = vshll.u32 %v838, 16
        %v873 = vrot.slane %v871, 5
        %v874 = vsel %vm241, %v869, %v873
        %v875 = vshrl.u32 %v838, 16
        %v877 = vrot.slane %v875, 4
        %v878 = vor.u32 %v877, %v873
        %v879 = vrot.slane %v878, 4
        %v881 = vshll.u32 %v853, 16
        %v883 = vrot.slane %v881, 5
        %v884 = vsel %vm241, %v879, %v883
        %v886 = vshrl.u32 %v839, 16
        %v888 = vrot.slane %v886, 4
        %v889 = vshll.u32 %v839, 16
        %v891 = vrot.slane %v889, 5
        %v892 = vor.u32 %v888, %v891
        %v893 = vrot.slane %v892, 4
        %v895 = vshll.u32 %v840, 16
        %v897 = vrot.slane %v895, 5
        %v898 = vsel %vm241, %v893, %v897
        %v899 = vshrl.u32 %v840, 16
        %v901 = vrot.slane %v899, 4
        %v902 = vor.u32 %v901, %v897
        %v903 = vrot.slane %v902, 4
        %v905 = vshll.u32 %v854, 16
        %v907 = vrot.slane %v905, 5
        %v908 = vsel %vm241, %v903, %v907
        %v910 = vshrl.u32 %v841, 16
        %v912 = vrot.slane %v910, 4
        %v913 = vshll.u32 %v841, 16
        %v915 = vrot.slane %v913, 5
        %v916 = vor.u32 %v912, %v915
        %v917 = vrot.slane %v916, 4
        %v919 = vshll.u32 %v842, 16
        %v921 = vrot.slane %v919, 5
        %v922 = vsel %vm241, %v917, %v921
        %v923 = vshrl.u32 %v842, 16
        %v925 = vrot.slane %v923, 4
        %v926 = vor.u32 %v925, %v921
        %v927 = vrot.slane %v926, 4
        %v929 = vshll.u32 %v855, 16
        %v931 = vrot.slane %v929, 5
        %v932 = vsel %vm241, %v927, %v931
        %v934 = vshrl.u32 %v843, 16
        %v936 = vrot.slane %v934, 4
        %v937 = vshll.u32 %v843, 16
        %v939 = vrot.slane %v937, 5
        %v940 = vor.u32 %v936, %v939
        %v941 = vrot.slane %v940, 4
        %v943 = vshll.u32 %v844, 16
        %v945 = vrot.slane %v943, 5
        %v946 = vsel %vm241, %v941, %v945
        %v947 = vshrl.u32 %v844, 16
        %v949 = vrot.slane %v947, 4
        %v950 = vor.u32 %v949, %v945
        %v951 = vrot.slane %v950, 4
        %v953 = vshll.u32 %v856, 16
        %v955 = vrot.slane %v953, 5
        %v956 = vsel %vm241, %v951, %v955
        %v958 = vshrl.u32 %v845, 16
        %v960 = vrot.slane %v958, 4
        %v961 = vshll.u32 %v845, 16
        %v963 = vrot.slane %v961, 5
        %v964 = vor.u32 %v960, %v963
        %v965 = vrot.slane %v964, 4
        %v967 = vshll.u32 %v846, 16
        %v969 = vrot.slane %v967, 5
        %v970 = vsel %vm241, %v965, %v969
        %v971 = vshrl.u32 %v846, 16
        %v973 = vrot.slane %v971, 4
        %v974 = vor.u32 %v973, %v969
        %v975 = vrot.slane %v974, 4
        %v977 = vshll.u32 %v857, 16
        %v979 = vrot.slane %v977, 5
        %v980 = vsel %vm241, %v975, %v979
        %v982 = vshrl.u32 %v847, 16
        %v984 = vrot.slane %v982, 4
        %v985 = vshll.u32 %v847, 16
        %v987 = vrot.slane %v985, 5
        %v988 = vor.u32 %v984, %v987
        %v989 = vrot.slane %v988, 4
        %v991 = vshll.u32 %v848, 16
        %v993 = vrot.slane %v991, 5
        %v994 = vsel %vm241, %v989, %v993
        %v995 = vshrl.u32 %v848, 16
        %v997 = vrot.slane %v995, 4
        %v998 = vor.u32 %v997, %v993
        %v999 = vrot.slane %v998, 4
        %v1001 = vshll.u32 %v858, 16
        %v1003 = vrot.slane %v1001, 5
        %v1004 = vsel %vm241, %v999, %v1003
        %v1006 = vshrl.u32 %v849, 16
        %v1008 = vrot.slane %v1006, 4
        %v1009 = vshll.u32 %v849, 16
        %v1011 = vrot.slane %v1009, 5
        %v1012 = vor.u32 %v1008, %v1011
        %v1013 = vrot.slane %v1012, 4
        %v1015 = vshll.u32 %v850, 16
        %v1017 = vrot.slane %v1015, 5
        %v1018 = vsel %vm241, %v1013, %v1017
        %v1019 = vshrl.u32 %v850, 16
        %v1021 = vrot.slane %v1019, 4
        %v1022 = vor.u32 %v1021, %v1017
        %v1023 = vrot.slane %v1022, 4
        %v1025 = vshll.u32 %v859, 16
        %v1027 = vrot.slane %v1025, 5
        %v1028 = vsel %vm241, %v1023, %v1027
        %v1030 = vshrl.u32 %v851, 16
        %v1032 = vrot.slane %v1030, 4
        %v1033 = vshll.u32 %v851, 16
        %v1035 = vrot.slane %v1033, 5
        %v1036 = vor.u32 %v1032, %v1035
        %v1037 = vrot.slane %v1036, 4
        %v1039 = vshll.u32 %v852, 16
        %v1041 = vrot.slane %v1039, 5
        %v1042 = vsel %vm241, %v1037, %v1041
        %v1043 = vshrl.u32 %v852, 16
        %v1045 = vrot.slane %v1043, 4
        %v1046 = vor.u32 %v1045, %v1041
        %v1047 = vrot.slane %v1046, 4
        %v1049 = vshll.u32 %v860, 16
        %v1051 = vrot.slane %v1049, 5
        %v1052 = vsel %vm241, %v1047, %v1051
        %v1053 = vld [vmem:[%s836] sm:$0xe]
        %v1054 = vld [vmem:[%s836 + $0xc] sm:$0xe]
        %v1055 = vld [vmem:[%s836 + $0x18] sm:$0xe]
        %v1056 = vld [vmem:[%s836 + $0x24] sm:$0xe]
        %v1057 = vld [vmem:[%s836 + $0x30] sm:$0xe]
        %v1058 = vld [vmem:[%s836 + $0x3c] sm:$0xe]
        %v1059 = vld [vmem:[%s836 + $0x48] sm:$0xe]
        %v1060 = vld [vmem:[%s836 + $0x54] sm:$0xe]
        %v1085 = vrot.slane %v1053, 5
        %v1086 = vrot.slane %v1085, 4
        %v1087 = vrot.slane %v838, 5
        %v1088 = vsel %vm468, %v1086, %v1087
        %v1089 = vrot.slane %v1087, 4
        %v1090 = vrot.slane %v853, 5
        %v1091 = vsel %vm468, %v1089, %v1090
        %v1092 = vrot.slane %v1054, 5
        %v1093 = vrot.slane %v1092, 4
        %v1094 = vrot.slane %v840, 5
        %v1095 = vsel %vm468, %v1093, %v1094
        %v1096 = vrot.slane %v1094, 4
        %v1097 = vrot.slane %v854, 5
        %v1098 = vsel %vm468, %v1096, %v1097
        %v1099 = vrot.slane %v1055, 5
        %v1100 = vrot.slane %v1099, 4
        %v1101 = vrot.slane %v842, 5
        %v1102 = vsel %vm468, %v1100, %v1101
        %v1103 = vrot.slane %v1101, 4
        %v1104 = vrot.slane %v855, 5
        %v1105 = vsel %vm468, %v1103, %v1104
        %v1106 = vrot.slane %v1056, 5
        %v1107 = vrot.slane %v1106, 4
        %v1108 = vrot.slane %v844, 5
        %v1109 = vsel %vm468, %v1107, %v1108
        %v1110 = vrot.slane %v1108, 4
        %v1111 = vrot.slane %v856, 5
        %v1112 = vsel %vm468, %v1110, %v1111
        %v1113 = vrot.slane %v1057, 5
        %v1114 = vrot.slane %v1113, 4
        %v1115 = vrot.slane %v846, 5
        %v1116 = vsel %vm468, %v1114, %v1115
        %v1117 = vrot.slane %v1115, 4
        %v1118 = vrot.slane %v857, 5
        %v1119 = vsel %vm468, %v1117, %v1118
        %v1120 = vrot.slane %v1058, 5
        %v1121 = vrot.slane %v1120, 4
        %v1122 = vrot.slane %v848, 5
        %v1123 = vsel %vm468, %v1121, %v1122
        %v1124 = vrot.slane %v1122, 4
        %v1125 = vrot.slane %v858, 5
        %v1126 = vsel %vm468, %v1124, %v1125
        %v1127 = vrot.slane %v1059, 5
        %v1128 = vrot.slane %v1127, 4
        %v1129 = vrot.slane %v850, 5
        %v1130 = vsel %vm468, %v1128, %v1129
        %v1131 = vrot.slane %v1129, 4
        %v1132 = vrot.slane %v859, 5
        %v1133 = vsel %vm468, %v1131, %v1132
        %v1134 = vrot.slane %v1060, 5
        %v1135 = vrot.slane %v1134, 4
        %v1136 = vrot.slane %v852, 5
        %v1137 = vsel %vm468, %v1135, %v1136
        %v1138 = vrot.slane %v1136, 4
        %v1139 = vrot.slane %v860, 5
        %v1140 = vsel %vm468, %v1138, %v1139
        %v1149 = vunpack.c.l.b16 %v215
        %v1150 = vunpack.c.l.b16 %v216
        %v1151 = vunpack.c.l.b16 %v217
        %v1152 = vunpack.c.l.b16 %v218
        %v1153 = vunpack.c.l.b16 %v219
        %v1154 = vunpack.c.l.b16 %v220
        %v1155 = vunpack.c.l.b16 %v221
        %v1156 = vunpack.c.l.b16 %v222
        %v1157 = vunpack.c.l.b16 %v223
        %v1158 = vunpack.c.l.b16 %v224
        %v1159 = vunpack.c.l.b16 %v225
        %v1160 = vunpack.c.l.b16 %v226
        %v1161 = vunpack.c.l.b16 %v227
        %v1162 = vunpack.c.l.b16 %v228
        %v1163 = vunpack.c.l.b16 %v229
        %v1164 = vunpack.c.l.b16 %v230
        %v1165 = vpack.c.b16 %v1150, %v1149
        %v1166 = vpack.c.b16 %v1152, %v1151
        %v1167 = vpack.c.b16 %v1154, %v1153
        %v1168 = vpack.c.b16 %v1156, %v1155
        %v1169 = vpack.c.b16 %v1158, %v1157
        %v1170 = vpack.c.b16 %v1160, %v1159
        %v1171 = vpack.c.b16 %v1162, %v1161
        %v1172 = vpack.c.b16 %v1164, %v1163
        %v1173 = vunpack.c.l.b16 %v255
        %v1174 = vunpack.c.l.b16 %v265
        %v1175 = vunpack.c.l.b16 %v279
        %v1176 = vunpack.c.l.b16 %v289
        %v1177 = vunpack.c.l.b16 %v303
        %v1178 = vunpack.c.l.b16 %v313
        %v1179 = vunpack.c.l.b16 %v327
        %v1180 = vunpack.c.l.b16 %v337
        %v1181 = vunpack.c.l.b16 %v351
        %v1182 = vunpack.c.l.b16 %v361
        %v1183 = vunpack.c.l.b16 %v375
        %v1184 = vunpack.c.l.b16 %v385
        %v1185 = vunpack.c.l.b16 %v399
        %v1186 = vunpack.c.l.b16 %v409
        %v1187 = vunpack.c.l.b16 %v423
        %v1188 = vunpack.c.l.b16 %v433
        %v1189 = vpack.c.b16 %v1174, %v1173
        %v1190 = vpack.c.b16 %v1176, %v1175
        %v1191 = vpack.c.b16 %v1178, %v1177
        %v1192 = vpack.c.b16 %v1180, %v1179
        %v1193 = vpack.c.b16 %v1182, %v1181
        %v1194 = vpack.c.b16 %v1184, %v1183
        %v1195 = vpack.c.b16 %v1186, %v1185
        %v1196 = vpack.c.b16 %v1188, %v1187
        %1197 = vrot.lane.b32.xlu0 %v1189, 4
        %v1198 = vpop.permute.xlu0 %1197
        %1199 = vrot.lane.b32.xlu0 %v1190, 4
        %v1200 = vpop.permute.xlu0 %1199
        %1201 = vrot.lane.b32.xlu0 %v1191, 4
        %v1202 = vpop.permute.xlu0 %1201
        %1203 = vrot.lane.b32.xlu0 %v1192, 4
        %v1204 = vpop.permute.xlu0 %1203
        %1205 = vrot.lane.b32.xlu0 %v1193, 4
        %v1206 = vpop.permute.xlu0 %1205
        %1207 = vrot.lane.b32.xlu0 %v1194, 4
        %v1208 = vpop.permute.xlu0 %1207
        %1209 = vrot.lane.b32.xlu0 %v1195, 4
        %v1210 = vpop.permute.xlu0 %1209
        %1211 = vrot.lane.b32.xlu0 %v1196, 4
        %v1212 = vpop.permute.xlu0 %1211
        %v1213 = vunpack.c.l.b16 %v472
        %v1214 = vunpack.c.l.b16 %v475
        %v1215 = vunpack.c.l.b16 %v479
        %v1216 = vunpack.c.l.b16 %v482
        %v1217 = vunpack.c.l.b16 %v486
        %v1218 = vunpack.c.l.b16 %v489
        %v1219 = vunpack.c.l.b16 %v493
        %v1220 = vunpack.c.l.b16 %v496
        %v1221 = vunpack.c.l.b16 %v500
        %v1222 = vunpack.c.l.b16 %v503
        %v1223 = vunpack.c.l.b16 %v507
        %v1224 = vunpack.c.l.b16 %v510
        %v1225 = vunpack.c.l.b16 %v514
        %v1226 = vunpack.c.l.b16 %v517
        %v1227 = vunpack.c.l.b16 %v521
        %v1228 = vunpack.c.l.b16 %v524
        %v1229 = vpack.c.b16 %v1214, %v1213
        %v1230 = vpack.c.b16 %v1216, %v1215
        %v1231 = vpack.c.b16 %v1218, %v1217
        %v1232 = vpack.c.b16 %v1220, %v1219
        %v1233 = vpack.c.b16 %v1222, %v1221
        %v1234 = vpack.c.b16 %v1224, %v1223
        %v1235 = vpack.c.b16 %v1226, %v1225
        %v1236 = vpack.c.b16 %v1228, %v1227
        %1237 = vrot.lane.b32.xlu0 %v1229, 8
        %v1238 = vpop.permute.xlu0 %1237
        %1239 = vrot.lane.b32.xlu0 %v1230, 8
        %v1240 = vpop.permute.xlu0 %1239
        %1241 = vrot.lane.b32.xlu0 %v1231, 8
        %v1242 = vpop.permute.xlu0 %1241
        %1243 = vrot.lane.b32.xlu0 %v1232, 8
        %v1244 = vpop.permute.xlu0 %1243
        %1245 = vrot.lane.b32.xlu0 %v1233, 8
        %v1246 = vpop.permute.xlu0 %1245
        %1247 = vrot.lane.b32.xlu0 %v1234, 8
        %v1248 = vpop.permute.xlu0 %1247
        %1249 = vrot.lane.b32.xlu0 %v1235, 8
        %v1250 = vpop.permute.xlu0 %1249
        %1251 = vrot.lane.b32.xlu0 %v1236, 8
        %v1252 = vpop.permute.xlu0 %1251
        %v1261 = vunpack.c.l.b16 %v529
        %v1262 = vunpack.c.l.b16 %v530
        %v1263 = vunpack.c.l.b16 %v531
        %v1264 = vunpack.c.l.b16 %v532
        %v1265 = vunpack.c.l.b16 %v533
        %v1266 = vunpack.c.l.b16 %v534
        %v1267 = vunpack.c.l.b16 %v535
        %v1268 = vunpack.c.l.b16 %v536
        %v1269 = vunpack.c.l.b16 %v537
        %v1270 = vunpack.c.l.b16 %v538
        %v1271 = vunpack.c.l.b16 %v539
        %v1272 = vunpack.c.l.b16 %v540
        %v1273 = vunpack.c.l.b16 %v541
        %v1274 = vunpack.c.l.b16 %v542
        %v1275 = vunpack.c.l.b16 %v543
        %v1276 = vunpack.c.l.b16 %v544
        %v1277 = vpack.c.b16 %v1262, %v1261
        %v1278 = vpack.c.b16 %v1264, %v1263
        %v1279 = vpack.c.b16 %v1266, %v1265
        %v1280 = vpack.c.b16 %v1268, %v1267
        %v1281 = vpack.c.b16 %v1270, %v1269
        %v1282 = vpack.c.b16 %v1272, %v1271
        %v1283 = vpack.c.b16 %v1274, %v1273
        %v1284 = vpack.c.b16 %v1276, %v1275
        %1285 = vrot.lane.b32.xlu0 %v1277, 12
        %v1286 = vpop.permute.xlu0 %1285
        %1287 = vrot.lane.b32.xlu0 %v1278, 12
        %v1288 = vpop.permute.xlu0 %1287
        %1289 = vrot.lane.b32.xlu0 %v1279, 12
        %v1290 = vpop.permute.xlu0 %1289
        %1291 = vrot.lane.b32.xlu0 %v1280, 12
        %v1292 = vpop.permute.xlu0 %1291
        %1293 = vrot.lane.b32.xlu0 %v1281, 12
        %v1294 = vpop.permute.xlu0 %1293
        %1295 = vrot.lane.b32.xlu0 %v1282, 12
        %v1296 = vpop.permute.xlu0 %1295
        %1297 = vrot.lane.b32.xlu0 %v1283, 12
        %v1298 = vpop.permute.xlu0 %1297
        %1299 = vrot.lane.b32.xlu0 %v1284, 12
        %v1300 = vpop.permute.xlu0 %1299
        %v1301 = vunpack.c.l.b16 %v566
        %v1302 = vunpack.c.l.b16 %v576
        %v1303 = vunpack.c.l.b16 %v590
        %v1304 = vunpack.c.l.b16 %v600
        %v1305 = vunpack.c.l.b16 %v614
        %v1306 = vunpack.c.l.b16 %v624
        %v1307 = vunpack.c.l.b16 %v638
        %v1308 = vunpack.c.l.b16 %v648
        %v1309 = vunpack.c.l.b16 %v662
        %v1310 = vunpack.c.l.b16 %v672
        %v1311 = vunpack.c.l.b16 %v686
        %v1312 = vunpack.c.l.b16 %v696
        %v1313 = vunpack.c.l.b16 %v710
        %v1314 = vunpack.c.l.b16 %v720
        %v1315 = vunpack.c.l.b16 %v734
        %v1316 = vunpack.c.l.b16 %v744
        %v1317 = vpack.c.b16 %v1302, %v1301
        %v1318 = vpack.c.b16 %v1304, %v1303
        %v1319 = vpack.c.b16 %v1306, %v1305
        %v1320 = vpack.c.b16 %v1308, %v1307
        %v1321 = vpack.c.b16 %v1310, %v1309
        %v1322 = vpack.c.b16 %v1312, %v1311
        %v1323 = vpack.c.b16 %v1314, %v1313
        %v1324 = vpack.c.b16 %v1316, %v1315
        %1325 = vrot.lane.b32.xlu0 %v1317, 16
        %v1326 = vpop.permute.xlu0 %1325
        %1327 = vrot.lane.b32.xlu0 %v1318, 16
        %v1328 = vpop.permute.xlu0 %1327
        %1329 = vrot.lane.b32.xlu0 %v1319, 16
        %v1330 = vpop.permute.xlu0 %1329
        %1331 = vrot.lane.b32.xlu0 %v1320, 16
        %v1332 = vpop.permute.xlu0 %1331
        %1333 = vrot.lane.b32.xlu0 %v1321, 16
        %v1334 = vpop.permute.xlu0 %1333
        %1335 = vrot.lane.b32.xlu0 %v1322, 16
        %v1336 = vpop.permute.xlu0 %1335
        %1337 = vrot.lane.b32.xlu0 %v1323, 16
        %v1338 = vpop.permute.xlu0 %1337
        %1339 = vrot.lane.b32.xlu0 %v1324, 16
        %v1340 = vpop.permute.xlu0 %1339
        %v1341 = vunpack.c.l.b16 %v780
        %v1342 = vunpack.c.l.b16 %v783
        %v1343 = vunpack.c.l.b16 %v787
        %v1344 = vunpack.c.l.b16 %v790
        %v1345 = vunpack.c.l.b16 %v794
        %v1346 = vunpack.c.l.b16 %v797
        %v1347 = vunpack.c.l.b16 %v801
        %v1348 = vunpack.c.l.b16 %v804
        %v1349 = vunpack.c.l.b16 %v808
        %v1350 = vunpack.c.l.b16 %v811
        %v1351 = vunpack.c.l.b16 %v815
        %v1352 = vunpack.c.l.b16 %v818
        %v1353 = vunpack.c.l.b16 %v822
        %v1354 = vunpack.c.l.b16 %v825
        %v1355 = vunpack.c.l.b16 %v829
        %v1356 = vunpack.c.l.b16 %v832
        %v1357 = vpack.c.b16 %v1342, %v1341
        %v1358 = vpack.c.b16 %v1344, %v1343
        %v1359 = vpack.c.b16 %v1346, %v1345
        %v1360 = vpack.c.b16 %v1348, %v1347
        %v1361 = vpack.c.b16 %v1350, %v1349
        %v1362 = vpack.c.b16 %v1352, %v1351
        %v1363 = vpack.c.b16 %v1354, %v1353
        %v1364 = vpack.c.b16 %v1356, %v1355
        %1365 = vrot.lane.b32.xlu0 %v1357, 20
        %v1366 = vpop.permute.xlu0 %1365
        %1367 = vrot.lane.b32.xlu0 %v1358, 20
        %v1368 = vpop.permute.xlu0 %1367
        %1369 = vrot.lane.b32.xlu0 %v1359, 20
        %v1370 = vpop.permute.xlu0 %1369
        %1371 = vrot.lane.b32.xlu0 %v1360, 20
        %v1372 = vpop.permute.xlu0 %1371
        %1373 = vrot.lane.b32.xlu0 %v1361, 20
        %v1374 = vpop.permute.xlu0 %1373
        %1375 = vrot.lane.b32.xlu0 %v1362, 20
        %v1376 = vpop.permute.xlu0 %1375
        %1377 = vrot.lane.b32.xlu0 %v1363, 20
        %v1378 = vpop.permute.xlu0 %1377
        %1379 = vrot.lane.b32.xlu0 %v1364, 20
        %v1380 = vpop.permute.xlu0 %1379
        %v1389 = vunpack.c.l.b16 %v837
        %v1390 = vunpack.c.l.b16 %v838
        %v1391 = vunpack.c.l.b16 %v839
        %v1392 = vunpack.c.l.b16 %v840
        %v1393 = vunpack.c.l.b16 %v841
        %v1394 = vunpack.c.l.b16 %v842
        %v1395 = vunpack.c.l.b16 %v843
        %v1396 = vunpack.c.l.b16 %v844
        %v1397 = vunpack.c.l.b16 %v845
        %v1398 = vunpack.c.l.b16 %v846
        %v1399 = vunpack.c.l.b16 %v847
        %v1400 = vunpack.c.l.b16 %v848
        %v1401 = vunpack.c.l.b16 %v849
        %v1402 = vunpack.c.l.b16 %v850
        %v1403 = vunpack.c.l.b16 %v851
        %v1404 = vunpack.c.l.b16 %v852
        %v1405 = vpack.c.b16 %v1390, %v1389
        %v1406 = vpack.c.b16 %v1392, %v1391
        %v1407 = vpack.c.b16 %v1394, %v1393
        %v1408 = vpack.c.b16 %v1396, %v1395
        %v1409 = vpack.c.b16 %v1398, %v1397
        %v1410 = vpack.c.b16 %v1400, %v1399
        %v1411 = vpack.c.b16 %v1402, %v1401
        %v1412 = vpack.c.b16 %v1404, %v1403
        %1413 = vrot.lane.b32.xlu0 %v1405, 24
        %v1414 = vpop.permute.xlu0 %1413
        %1415 = vrot.lane.b32.xlu0 %v1406, 24
        %v1416 = vpop.permute.xlu0 %1415
        %1417 = vrot.lane.b32.xlu0 %v1407, 24
        %v1418 = vpop.permute.xlu0 %1417
        %1419 = vrot.lane.b32.xlu0 %v1408, 24
        %v1420 = vpop.permute.xlu0 %1419
        %1421 = vrot.lane.b32.xlu0 %v1409, 24
        %v1422 = vpop.permute.xlu0 %1421
        %1423 = vrot.lane.b32.xlu0 %v1410, 24
        %v1424 = vpop.permute.xlu0 %1423
        %1425 = vrot.lane.b32.xlu0 %v1411, 24
        %v1426 = vpop.permute.xlu0 %1425
        %1427 = vrot.lane.b32.xlu0 %v1412, 24
        %v1428 = vpop.permute.xlu0 %1427
        %v1429 = vunpack.c.l.b16 %v874
        %v1430 = vunpack.c.l.b16 %v884
        %v1431 = vunpack.c.l.b16 %v898
        %v1432 = vunpack.c.l.b16 %v908
        %v1433 = vunpack.c.l.b16 %v922
        %v1434 = vunpack.c.l.b16 %v932
        %v1435 = vunpack.c.l.b16 %v946
        %v1436 = vunpack.c.l.b16 %v956
        %v1437 = vunpack.c.l.b16 %v970
        %v1438 = vunpack.c.l.b16 %v980
        %v1439 = vunpack.c.l.b16 %v994
        %v1440 = vunpack.c.l.b16 %v1004
        %v1441 = vunpack.c.l.b16 %v1018
        %v1442 = vunpack.c.l.b16 %v1028
        %v1443 = vunpack.c.l.b16 %v1042
        %v1444 = vunpack.c.l.b16 %v1052
        %v1445 = vpack.c.b16 %v1430, %v1429
        %v1446 = vpack.c.b16 %v1432, %v1431
        %v1447 = vpack.c.b16 %v1434, %v1433
        %v1448 = vpack.c.b16 %v1436, %v1435
        %v1449 = vpack.c.b16 %v1438, %v1437
        %v1450 = vpack.c.b16 %v1440, %v1439
        %v1451 = vpack.c.b16 %v1442, %v1441
        %v1452 = vpack.c.b16 %v1444, %v1443
        %1453 = vrot.lane.b32.xlu0 %v1445, 28
        %v1454 = vpop.permute.xlu0 %1453
        %1455 = vrot.lane.b32.xlu0 %v1446, 28
        %v1456 = vpop.permute.xlu0 %1455
        %1457 = vrot.lane.b32.xlu0 %v1447, 28
        %v1458 = vpop.permute.xlu0 %1457
        %1459 = vrot.lane.b32.xlu0 %v1448, 28
        %v1460 = vpop.permute.xlu0 %1459
        %1461 = vrot.lane.b32.xlu0 %v1449, 28
        %v1462 = vpop.permute.xlu0 %1461
        %1463 = vrot.lane.b32.xlu0 %v1450, 28
        %v1464 = vpop.permute.xlu0 %1463
        %1465 = vrot.lane.b32.xlu0 %v1451, 28
        %v1466 = vpop.permute.xlu0 %1465
        %1467 = vrot.lane.b32.xlu0 %v1452, 28
        %v1468 = vpop.permute.xlu0 %1467
        %v1469 = vunpack.c.l.b16 %v1088
        %v1470 = vunpack.c.l.b16 %v1091
        %v1471 = vunpack.c.l.b16 %v1095
        %v1472 = vunpack.c.l.b16 %v1098
        %v1473 = vunpack.c.l.b16 %v1102
        %v1474 = vunpack.c.l.b16 %v1105
        %v1475 = vunpack.c.l.b16 %v1109
        %v1476 = vunpack.c.l.b16 %v1112
        %v1477 = vunpack.c.l.b16 %v1116
        %v1478 = vunpack.c.l.b16 %v1119
        %v1479 = vunpack.c.l.b16 %v1123
        %v1480 = vunpack.c.l.b16 %v1126
        %v1481 = vunpack.c.l.b16 %v1130
        %v1482 = vunpack.c.l.b16 %v1133
        %v1483 = vunpack.c.l.b16 %v1137
        %v1484 = vunpack.c.l.b16 %v1140
        %v1485 = vpack.c.b16 %v1470, %v1469
        %v1486 = vpack.c.b16 %v1472, %v1471
        %v1487 = vpack.c.b16 %v1474, %v1473
        %v1488 = vpack.c.b16 %v1476, %v1475
        %v1489 = vpack.c.b16 %v1478, %v1477
        %v1490 = vpack.c.b16 %v1480, %v1479
        %v1491 = vpack.c.b16 %v1482, %v1481
        %v1492 = vpack.c.b16 %v1484, %v1483
        %1493 = vrot.lane.b32.xlu0 %v1485, 32
        %v1494 = vpop.permute.xlu0 %1493
        %1495 = vrot.lane.b32.xlu0 %v1486, 32
        %v1496 = vpop.permute.xlu0 %1495
        %1497 = vrot.lane.b32.xlu0 %v1487, 32
        %v1498 = vpop.permute.xlu0 %1497
        %1499 = vrot.lane.b32.xlu0 %v1488, 32
        %v1500 = vpop.permute.xlu0 %1499
        %1501 = vrot.lane.b32.xlu0 %v1489, 32
        %v1502 = vpop.permute.xlu0 %1501
        %1503 = vrot.lane.b32.xlu0 %v1490, 32
        %v1504 = vpop.permute.xlu0 %1503
        %1505 = vrot.lane.b32.xlu0 %v1491, 32
        %v1506 = vpop.permute.xlu0 %1505
        %1507 = vrot.lane.b32.xlu0 %v1492, 32
        %v1508 = vpop.permute.xlu0 %1507
        %vm1509 = vcmask 31744
        %v1512 = vsel %vm1509, %v1165, %v1198
        %v1515 = vsel %vm1509, %v1166, %v1200
        %v1518 = vsel %vm1509, %v1167, %v1202
        %v1521 = vsel %vm1509, %v1168, %v1204
        %v1524 = vsel %vm1509, %v1169, %v1206
        %v1527 = vsel %vm1509, %v1170, %v1208
        %v1530 = vsel %vm1509, %v1171, %v1210
        %v1533 = vsel %vm1509, %v1172, %v1212
        %vm1534 = vcmask 64512
        %v1536 = vsel %vm1534, %v1512, %v1238
        %v1538 = vsel %vm1534, %v1515, %v1240
        %v1540 = vsel %vm1534, %v1518, %v1242
        %v1542 = vsel %vm1534, %v1521, %v1244
        %v1544 = vsel %vm1534, %v1524, %v1246
        %v1546 = vsel %vm1534, %v1527, %v1248
        %v1548 = vsel %vm1534, %v1530, %v1250
        %v1550 = vsel %vm1534, %v1533, %v1252
        %vm1551 = vcmask 97280
        %v1553 = vsel %vm1551, %v1536, %v1286
        %v1555 = vsel %vm1551, %v1538, %v1288
        %v1557 = vsel %vm1551, %v1540, %v1290
        %v1559 = vsel %vm1551, %v1542, %v1292
        %v1561 = vsel %vm1551, %v1544, %v1294
        %v1563 = vsel %vm1551, %v1546, %v1296
        %v1565 = vsel %vm1551, %v1548, %v1298
        %v1567 = vsel %vm1551, %v1550, %v1300
        %vm1568 = vcmask 130048
        %v1570 = vsel %vm1568, %v1553, %v1326
        %v1572 = vsel %vm1568, %v1555, %v1328
        %v1574 = vsel %vm1568, %v1557, %v1330
        %v1576 = vsel %vm1568, %v1559, %v1332
        %v1578 = vsel %vm1568, %v1561, %v1334
        %v1580 = vsel %vm1568, %v1563, %v1336
        %v1582 = vsel %vm1568, %v1565, %v1338
        %v1584 = vsel %vm1568, %v1567, %v1340
        %vm1585 = vcmask 162816
        %v1587 = vsel %vm1585, %v1570, %v1366
        %v1589 = vsel %vm1585, %v1572, %v1368
        %v1591 = vsel %vm1585, %v1574, %v1370
        %v1593 = vsel %vm1585, %v1576, %v1372
        %v1595 = vsel %vm1585, %v1578, %v1374
        %v1597 = vsel %vm1585, %v1580, %v1376
        %v1599 = vsel %vm1585, %v1582, %v1378
        %v1601 = vsel %vm1585, %v1584, %v1380
        %vm1602 = vcmask 195584
        %v1604 = vsel %vm1602, %v1587, %v1414
        %v1606 = vsel %vm1602, %v1589, %v1416
        %v1608 = vsel %vm1602, %v1591, %v1418
        %v1610 = vsel %vm1602, %v1593, %v1420
        %v1612 = vsel %vm1602, %v1595, %v1422
        %v1614 = vsel %vm1602, %v1597, %v1424
        %v1616 = vsel %vm1602, %v1599, %v1426
        %v1618 = vsel %vm1602, %v1601, %v1428
        %vm1619 = vcmask 228352
        %v1621 = vsel %vm1619, %v1604, %v1454
        %v1623 = vsel %vm1619, %v1606, %v1456
        %v1625 = vsel %vm1619, %v1608, %v1458
        %v1627 = vsel %vm1619, %v1610, %v1460
        %v1629 = vsel %vm1619, %v1612, %v1462
        %v1631 = vsel %vm1619, %v1614, %v1464
        %v1633 = vsel %vm1619, %v1616, %v1466
        %v1635 = vsel %vm1619, %v1618, %v1468
        %vm1636 = vcmask 261120
        %v1638 = vsel %vm1636, %v1621, %v1494
        %v1640 = vsel %vm1636, %v1623, %v1496
        %v1642 = vsel %vm1636, %v1625, %v1498
        %v1644 = vsel %vm1636, %v1627, %v1500
        %v1646 = vsel %vm1636, %v1629, %v1502
        %v1648 = vsel %vm1636, %v1631, %v1504
        %v1650 = vsel %vm1636, %v1633, %v1506
        %v1652 = vsel %vm1636, %v1635, %v1508
        %v1653 = vld [vmem:[%s1] sm:$0xf]
        %v1654 = vld [vmem:[%s1 + $0x4] sm:$0xf]
        %v1655 = vld [vmem:[%s1 + $0x8] sm:$0xf]
        %v1656 = vld [vmem:[%s1 + $0xc] sm:$0xf]
        %v1657 = vld [vmem:[%s1 + $0x10] sm:$0x3]
        %v1663 = vunpack.c.l.b16 %v1653
        %v1664 = vunpack.c.l.b16 %v1654
        %v1665 = vunpack.c.l.b16 %v1655
        %v1666 = vunpack.c.l.b16 %v1656
        %v1667 = vunpack.c.l.b16 %v1657
        %v1668 = vpack.c.b16 %v1664, %v1663
        %v1669 = vpack.c.b16 %v1666, %v1665
        %v1670 = vpack.c.b16 %v1667, %v1667
        %vm1673 = vcmask 293888
        %v1674 = vsel %vm1673, %v1638, 0
        %v1676 = vsel %vm1673, %v1640, 0
        %v1678 = vsel %vm1673, %v1642, 0
        %v1680 = vsel %vm1673, %v1644, 0
        %v1682 = vsel %vm1673, %v1646, 0
        %v1684 = vsel %vm1673, %v1648, 0
        %v1686 = vsel %vm1673, %v1650, 0
        %v1688 = vsel %vm1673, %v1652, 0
        %vm1690 = vcmask 1041408
        %v1692 = vsel %vm1690, %v1670, 0
        %1694 = vmatprep.subr.bf16.mxu0 0
        %1695 = vmatpush1.bf16.msra.mxu0 %v1668
        %1696 = vmatprep.subr.bf16.mxu0 0
        %1697 = vmatpush1.bf16.msra.mxu0 %v1669
        %1698 = vmatprep.subr.bf16.mxu0 0
        %1699 = vmatpush1.bf16.msra.mxu0 %v1692
        %1700 = vmatprep.subr.bf16.mxu0 0
        %1701 = vmatpush1.bf16.msra.mxu0 0
        %1702 = vmatprep.subr.bf16.mxu0 0
        %1703 = vmatpush1.bf16.msra.mxu0 0
        %1704 = vmatprep.subr.bf16.mxu0 0
        %1705 = vmatpush1.bf16.msra.mxu0 0
        %1706 = vmatprep.subr.bf16.mxu0 0
        %1707 = vmatpush1.bf16.msra.mxu0 0
        %1708 = vmatprep.subr.bf16.mxu0 0
        %1709 = vmatpush1.bf16.msra.mxu0 0
        %1710 = vmatprep.subr.bf16.mxu0 0
        %1711 = vmatpush1.bf16.msra.mxu0 0
        %1712 = vmatprep.subr.bf16.mxu0 0
        %1713 = vmatpush1.bf16.msra.mxu0 0
        %1714 = vmatprep.subr.bf16.mxu0 0
        %1715 = vmatpush1.bf16.msra.mxu0 0
        %1716 = vmatprep.subr.bf16.mxu0 0
        %1717 = vmatpush1.bf16.msra.mxu0 0
        %1718 = vmatprep.subr.bf16.mxu0 0
        %1719 = vmatpush1.bf16.msra.mxu0 0
        %1720 = vmatprep.subr.bf16.mxu0 0
        %1721 = vmatpush1.bf16.msra.mxu0 0
        %1722 = vmatprep.subr.bf16.mxu0 0
        %1723 = vmatpush1.bf16.msra.mxu0 0
        %1724 = vmatprep.subr.bf16.mxu0 0
        %1725 = vmatpush1.bf16.msra.mxu0 0
        %1726 = vmatprep.mubr.bf16.mxu0 0
        %1727 = vmatmul.mubr.bf16.gmra.mrb[0].mxu0 %v1674
        %v1728 = vpop.f32.mrb[0].mxu0
        %v1729 = vadd.f32 0.0, %v1728
        %v1730 = vpop.f32.mrb[0].mxu0
        %v1731 = vpop.f32.mrb[0].mxu0
        %v1732 = vadd.f32 0.0, %v1731
        %v1733 = vpop.f32.mrb[0].mxu0
        %1734 = vmatprep.mubr.bf16.mxu0 0
        %1735 = vmatmul.mubr.bf16.gmra.mrb[0].mxu0 %v1676
        %v1736 = vpop.f32.mrb[0].mxu0
        %v1737 = vadd.f32 0.0, %v1736
        %v1738 = vpop.f32.mrb[0].mxu0
        %v1739 = vpop.f32.mrb[0].mxu0
        %v1740 = vadd.f32 0.0, %v1739
        %v1741 = vpop.f32.mrb[0].mxu0
        %1742 = vmatprep.mubr.bf16.mxu0 0
        %1743 = vmatmul.mubr.bf16.gmra.mrb[0].mxu0 %v1678
        %v1744 = vpop.f32.mrb[0].mxu0
        %v1745 = vadd.f32 0.0, %v1744
        %v1746 = vpop.f32.mrb[0].mxu0
        %v1747 = vpop.f32.mrb[0].mxu0
        %v1748 = vadd.f32 0.0, %v1747
        %v1749 = vpop.f32.mrb[0].mxu0
        %1750 = vmatprep.mubr.bf16.mxu0 0
        %1751 = vmatmul.mubr.bf16.gmra.mrb[0].mxu0 %v1680
        %v1752 = vpop.f32.mrb[0].mxu0
        %v1753 = vadd.f32 0.0, %v1752
        %v1754 = vpop.f32.mrb[0].mxu0
        %v1755 = vpop.f32.mrb[0].mxu0
        %v1756 = vadd.f32 0.0, %v1755
        %v1757 = vpop.f32.mrb[0].mxu0
        %1758 = vmatprep.mubr.bf16.mxu0 0
        %1759 = vmatmul.mubr.bf16.gmra.mrb[0].mxu0 %v1682
        %v1760 = vpop.f32.mrb[0].mxu0
        %v1761 = vadd.f32 0.0, %v1760
        %v1762 = vpop.f32.mrb[0].mxu0
        %v1763 = vpop.f32.mrb[0].mxu0
        %v1764 = vadd.f32 0.0, %v1763
        %v1765 = vpop.f32.mrb[0].mxu0
        %1766 = vmatprep.mubr.bf16.mxu0 0
        %1767 = vmatmul.mubr.bf16.gmra.mrb[0].mxu0 %v1684
        %v1768 = vpop.f32.mrb[0].mxu0
        %v1769 = vadd.f32 0.0, %v1768
        %v1770 = vpop.f32.mrb[0].mxu0
        %v1771 = vpop.f32.mrb[0].mxu0
        %v1772 = vadd.f32 0.0, %v1771
        %v1773 = vpop.f32.mrb[0].mxu0
        %1774 = vmatprep.mubr.bf16.mxu0 0
        %1775 = vmatmul.mubr.bf16.gmra.mrb[0].mxu0 %v1686
        %v1776 = vpop.f32.mrb[0].mxu0
        %v1777 = vadd.f32 0.0, %v1776
        %v1778 = vpop.f32.mrb[0].mxu0
        %v1779 = vpop.f32.mrb[0].mxu0
        %v1780 = vadd.f32 0.0, %v1779
        %v1781 = vpop.f32.mrb[0].mxu0
        %1782 = vmatprep.mubr.bf16.mxu0 0
        %1783 = vmatmul.mubr.bf16.gmra.mrb[0].mxu0 %v1688
        %v1784 = vpop.f32.mrb[0].mxu0
        %v1785 = vadd.f32 0.0, %v1784
        %v1786 = vpop.f32.mrb[0].mxu0
        %v1787 = vpop.f32.mrb[0].mxu0
        %v1788 = vadd.f32 0.0, %v1787
        %v1789 = vpop.f32.mrb[0].mxu0
        %1790 = vdwg.mxu0
        %v1791 = vld [vmem:[%s2] sm:$0x1]
        %v1793 = vlaneseq
        %v1794 = vshrl.u32 %v1793, 7
        %v1795 = vsub.s32 0, %v1794
        %v1796 = vrot.slane %v1791, %v1795
        %v1798 = vmul.f32 %v1729, %v1796
        %v1799 = vmul.f32 %v1732, %v1796
        %v1800 = vmul.f32 %v1737, %v1796
        %v1801 = vmul.f32 %v1740, %v1796
        %v1802 = vmul.f32 %v1745, %v1796
        %v1803 = vmul.f32 %v1748, %v1796
        %v1804 = vmul.f32 %v1753, %v1796
        %v1805 = vmul.f32 %v1756, %v1796
        %v1806 = vmul.f32 %v1761, %v1796
        %v1807 = vmul.f32 %v1764, %v1796
        %v1808 = vmul.f32 %v1769, %v1796
        %v1809 = vmul.f32 %v1772, %v1796
        %v1810 = vmul.f32 %v1777, %v1796
        %v1811 = vmul.f32 %v1780, %v1796
        %v1812 = vmul.f32 %v1785, %v1796
        %v1813 = vmul.f32 %v1788, %v1796
        %v1814 = vld [vmem:[%s3] sm:$0x1]
        %v1816 = vlaneseq
        %v1817 = vshrl.u32 %v1816, 7
        %v1818 = vsub.s32 0, %v1817
        %v1819 = vrot.slane %v1814, %v1818
        %v1821 = vadd.f32 %v1798, %v1819
        %v1822 = vadd.f32 %v1799, %v1819
        %v1823 = vadd.f32 %v1800, %v1819
        %v1824 = vadd.f32 %v1801, %v1819
        %v1825 = vadd.f32 %v1802, %v1819
        %v1826 = vadd.f32 %v1803, %v1819
        %v1827 = vadd.f32 %v1804, %v1819
        %v1828 = vadd.f32 %v1805, %v1819
        %v1829 = vadd.f32 %v1806, %v1819
        %v1830 = vadd.f32 %v1807, %v1819
        %v1831 = vadd.f32 %v1808, %v1819
        %v1832 = vadd.f32 %v1809, %v1819
        %v1833 = vadd.f32 %v1810, %v1819
        %v1834 = vadd.f32 %v1811, %v1819
        %v1835 = vadd.f32 %v1812, %v1819
        %v1836 = vadd.f32 %v1813, %v1819
        %v1837 = vmax.f32 %v1821, 0.0
        %v1838 = vmax.f32 %v1822, 0.0
        %v1839 = vmax.f32 %v1823, 0.0
        %v1840 = vmax.f32 %v1824, 0.0
        %v1841 = vmax.f32 %v1825, 0.0
        %v1842 = vmax.f32 %v1826, 0.0
        %v1843 = vmax.f32 %v1827, 0.0
        %v1844 = vmax.f32 %v1828, 0.0
        %v1845 = vmax.f32 %v1829, 0.0
        %v1846 = vmax.f32 %v1830, 0.0
        %v1847 = vmax.f32 %v1831, 0.0
        %v1848 = vmax.f32 %v1832, 0.0
        %v1849 = vmax.f32 %v1833, 0.0
        %v1850 = vmax.f32 %v1834, 0.0
        %v1851 = vmax.f32 %v1835, 0.0
        %v1852 = vmax.f32 %v1836, 0.0
        %1853 = vxpose.xlu0.b32.start [1/16] %v1837, 128
        %1854 = vxpose.xlu0.b32.cont [2/16] %v1838, 128
        %1855 = vxpose.xlu0.b32.cont [3/16] %v1839, 128
        %1856 = vxpose.xlu0.b32.cont [4/16] %v1840, 128
        %1857 = vxpose.xlu0.b32.cont [5/16] %v1841, 128
        %1858 = vxpose.xlu0.b32.cont [6/16] %v1842, 128
        %1859 = vxpose.xlu0.b32.cont [7/16] %v1843, 128
        %1860 = vxpose.xlu0.b32.cont [8/16] %v1844, 128
        %1861 = vxpose.xlu0.b32.cont [9/16] %v1845, 128
        %1862 = vxpose.xlu0.b32.cont [10/16] %v1846, 128
        %1863 = vxpose.xlu0.b32.cont [11/16] %v1847, 128
        %1864 = vxpose.xlu0.b32.cont [12/16] %v1848, 128
        %1865 = vxpose.xlu0.b32.cont [13/16] %v1849, 128
        %1866 = vxpose.xlu0.b32.cont [14/16] %v1850, 128
        %1867 = vxpose.xlu0.b32.cont [15/16] %v1851, 128
        %1868 = vxpose.xlu0.b32.end [16/16] %v1852, 128
        %v1869 = vpop.trf.xlu0
        %v1870 = vpop.trf.xlu0
        %v1871 = vpop.trf.xlu0
        %v1872 = vpop.trf.xlu0
        %v1873 = vpop.trf.xlu0
        %v1874 = vpop.trf.xlu0
        %v1875 = vpop.trf.xlu0
        %v1876 = vpop.trf.xlu0
        %v1877 = vpop.trf.xlu0
        %v1878 = vpop.trf.xlu0
        %v1879 = vpop.trf.xlu0
        %v1880 = vpop.trf.xlu0
        %v1881 = vpop.trf.xlu0
        %v1882 = vpop.trf.xlu0
        %v1883 = vpop.trf.xlu0
        %v1884 = vpop.trf.xlu0
        %v1885 = vpack.c.bf16 %v1869, %v1869
        %1886 = vst [vmem:[%s204] sm:$0xf] %v1885
        %s1887 = sand.u32 %s129, 1
        %s1888 = scalar_lea.sflag [#allocation3], %s1887
        %s1889 = sand.u32 %s129, 1
        %s1890 = smul.addr %s1889, 4
        %s1891 = scalar_lea.vmem [#allocation2], %s1890
        // Predicated region
        $region37: #{tpu_custom_call.1} parent=35 // pred_check
          %p1892 = pneg %p139
        $region38: #{tpu_custom_call.1} parent=35 // pred_check_branch
          %1894 = sbr.rel (%p1892) target = $region40
        $region39: #{tpu_custom_call.1} parent=35 // pred_region
          %s1896 = ssub.s32 64, 64
          %1897 = vsyncadd %s1888, %s1896
          %s1898 = smul.addr %s22, 2
          %s1899 = sadd.s32 %s23, %s1898
          %s1900 = smul.addr %s1899, 64
          %s1901 = scalar_lea.hbm %s4, %s1900
          %s1903 = sshll.u32 %s1891, 4
          %s1904 = int_to_ptr.vmem [resolvable:$true] %s1903
          %1906 = dma.vmem_to_hbm [thread:$0]  %s1904, 64, %s1901, %s1888
        $region40: #{tpu_custom_call.1} parent=35 // pred_fallthru
          _
      $region36: #{tpu_custom_call.1} parent=5 // pred_fallthru
        _
      %p1907 = scmp.le.s32.totalorder 2, %s13
      // Predicated region
      $region41: #{tpu_custom_call.1} parent=5 // pred_check
        %p1908 = pneg %p1907
      $region42: #{tpu_custom_call.1} parent=5 // pred_check_branch
        %1910 = sbr.rel (%p1908) target = $region44
      $region43: #{tpu_custom_call.1} parent=5 // pred_region
        %s1911 = ssub.s32 %s13, 2
        // Predicated region
        $region45: #{tpu_custom_call.1} parent=43 // pred_check
          %p1912 = pneg %p145
        $region46: #{tpu_custom_call.1} parent=43 // pred_check_branch
          %1914 = sbr.rel (%p1912) target = $region48
        $region47: #{tpu_custom_call.1} parent=43 // pred_region
          %s1915 = sand.u32 %s130, 1
          %s1916 = scalar_lea.sflag [#allocation3], %s1915
          %s1917 = sand.u32 %s130, 1
          %s1918 = smul.addr %s1917, 4
          %s1919 = scalar_lea.vmem [#allocation2], %s1918
          %1920 = dma.done %s1916, 64
        $region48: #{tpu_custom_call.1} parent=43 // pred_fallthru
          _
      $region44: #{tpu_custom_call.1} parent=5 // pred_fallthru
        _
    $region6: #{tpu_custom_call.1} parent=1 // loop_footer
      %s17 = sadd.s32 1, %s13
    $region7: #{tpu_custom_call.1} parent=1 // loop_footer_branch
      %12 = sbr.rel target = $region3
    $region8: #{tpu_custom_call.1} parent=1 // loop_exit
      _
    %1921 = vsyncpa [#allocation3], 1
    %s1922 = scalar_lea.sflag [#allocation3], 1
    %1923 = vsyncpa %s1922, 1

</llo_original>
